<compile_context>
chip_gen: v6e
topology: v6e:2x2x1
jax: 0.10.0
libtpu: 0.0.40
codegen_flags: <defaults>
</compile_context>

<pallas_src>
import functools
import math

import jax
import jax.numpy as jnp
from jax.experimental import pallas as pl
from jax.experimental.pallas import tpu as pltpu


# ---------------------------------------------------------------------------
# small helpers
# ---------------------------------------------------------------------------
def _round_up(x: int, m: int) -> int:
    return ((x + m - 1) // m) * m


def _pick_tile(n: int, pref: int, multiple: int) -> int:
    """Largest divisor of n that is a multiple of `multiple` and <= pref.
    n is always padded to a multiple of 128, so this terminates at `multiple`."""
    t = min(pref, n)
    t -= t % multiple
    t = max(t, multiple)
    while n % t != 0:
        t -= multiple
    return t


def _vmem_budget_bytes() -> int:
    """Per-generation scoped-VMEM budget: ~70% of physical capacity, capped at
    100MB (v5e/v6e: 128MiB -> ~89MB; v7x: 64MiB -> ~45MB). Conservative fallback
    if the hardware query is unavailable."""
    cap = 64 * 1024 * 1024
    try:
        cap = int(pltpu.get_tpu_info().vmem_capacity_bytes)
    except Exception:
        pass
    return max(32 * 1024 * 1024, min(int(cap * 0.7), 100 * 1024 * 1024))


# ---------------------------------------------------------------------------
# Kernel 1: "prepare" pass over the adjacency matrix (row-tiled, parallel).
#   - zeroes the diagonal (if remove_self_loop)
#   - emits a compute-dtype copy of the masked adjacency
#   - emits row sums and PER-TILE PARTIAL column sums (reduced later in JAX,
#     so the grid axis stays "parallel" and can shard across v7x's 2 TCs)
# ---------------------------------------------------------------------------
def _prepare_kernel(a_ref, am_ref, rs_ref, cs_ref, *, remove_self_loop):
    i = pl.program_id(0)
    a = a_ref[...].astype(jnp.float32)
    tm, n = a.shape
    if remove_self_loop:
        col = jax.lax.broadcasted_iota(jnp.int32, (tm, n), 1)
        row = i * tm + jax.lax.broadcasted_iota(jnp.int32, (tm, n), 0)
        a = jnp.where(col == row, 0.0, a)
    am_ref[...] = a.astype(am_ref.dtype)
    rs_ref[...] = jnp.sum(a, axis=1, keepdims=True)
    cs_ref[...] = jnp.sum(a, axis=0, keepdims=True)[None]   # (1, 1, n)


def prepare_adjacency(adj, *, remove_self_loop, compute_dtype, vmem_limit):
    """adj is already padded to (n_pad, n_pad); NOT cast on the host (the cast
    happens inside the kernel so no extra N^2 f32 copy is materialized)."""
    n = adj.shape[0]
    in_bytes = jnp.dtype(adj.dtype).itemsize
    out_bytes = jnp.dtype(compute_dtype).itemsize
    # keep the double-buffered live set comfortably inside the budget
    per_row = 2 * n * (in_bytes + out_bytes)
    pref_rows = max(128, (vmem_limit // 2) // max(per_row, 1))
    tm = _pick_tile(n, pref_rows, 128)
    g = n // tm

    kern = functools.partial(_prepare_kernel, remove_self_loop=remove_self_loop)
    a_masked, row_sum, col_part = pl.pallas_call(
        kern,
        grid=(g,),
        in_specs=[pl.BlockSpec((tm, n), lambda i: (i, 0))],
        out_specs=(
            pl.BlockSpec((tm, n), lambda i: (i, 0)),
            pl.BlockSpec((tm, 1), lambda i: (i, 0)),
            pl.BlockSpec((1, 1, n), lambda i: (i, 0, 0)),
        ),
        out_shape=(
            jax.ShapeDtypeStruct((n, n), compute_dtype),
            jax.ShapeDtypeStruct((n, 1), jnp.float32),
            jax.ShapeDtypeStruct((g, 1, n), jnp.float32),
        ),
        compiler_params=pltpu.CompilerParams(
            dimension_semantics=("parallel",),
            vmem_limit_bytes=vmem_limit),
    )(adj)
    deg = row_sum[:, 0] + jnp.sum(col_part, axis=0)[0]
    inv_deg = jnp.where(deg == 0.0, 0.0, 1.0 / deg)          # masked_fill(inf, 0)
    return a_masked, inv_deg.reshape(n, 1).astype(jnp.float32)


# ---------------------------------------------------------------------------
# Kernel 2: hoisted feature transform  Y = X @ W^T   (row-tiled, f32 output)
# ---------------------------------------------------------------------------
def _linear_kernel(x_ref, wt_ref, y_ref):
    y_ref[...] = jnp.dot(x_ref[...], wt_ref[...],
                         preferred_element_type=jnp.float32).astype(y_ref.dtype)


def linear_transform(x, w_t, *, vmem_limit, row_tile=512):
    n, fin = x.shape
    fout = w_t.shape[1]
    tm = _pick_tile(n, row_tile, 128)
    return pl.pallas_call(
        _linear_kernel,
        grid=(n // tm,),
        in_specs=[pl.BlockSpec((tm, fin), lambda i: (i, 0)),
                  pl.BlockSpec((fin, fout), lambda i: (0, 0))],
        out_specs=pl.BlockSpec((tm, fout), lambda i: (i, 0)),
        out_shape=jax.ShapeDtypeStruct((n, fout), jnp.float32),
        compiler_params=pltpu.CompilerParams(
            dimension_semantics=("parallel",),
            vmem_limit_bytes=vmem_limit),
    )(x.astype(jnp.float32), w_t)


# ---------------------------------------------------------------------------
# Kernel 3 (resident fast path): the ENTIRE bidirectional forward in one
# grid-less pallas_call.  A is brought into VMEM once; z/s carries are f32 and
# only the MXU operands are cast to the compute dtype.
# ---------------------------------------------------------------------------
def _make_resident_kernel(coefs, with_identity, shared_adjacency):
    def kern(*refs):
        if shared_adjacency:
            (a1_ref, y1_ref, y2_ref, inv1_ref, inv2_ref,
             b1_ref, b2_ref, o_ref) = refs
            a2 = None
        else:
            (a1_ref, a2_ref, y1_ref, y2_ref, inv1_ref, inv2_ref,
             b1_ref, b2_ref, o_ref) = refs
            a2 = a2_ref[...]
        a1 = a1_ref[...]
        y1 = y1_ref[...]
        y2 = y2_ref[...]
        inv1 = inv1_ref[...]
        inv2 = inv2_ref[...]

        z1, z2 = y1, y2
        s1 = jnp.zeros_like(y1) + b1_ref[...]
        s2 = jnp.zeros_like(y2) + b2_ref[...]
        if with_identity:
            s1 = s1 + y1
            s2 = s2 + y2

        for c in coefs:
            z1c = z1.astype(a1.dtype)
            z2c = z2.astype(a1.dtype)
            z1 = inv1 * jnp.dot(a1, z1c, preferred_element_type=jnp.float32)
            if shared_adjacency:
                # reverse direction == A^T @ z2, contracting the row axis of the
                # SAME adjacency buffer (adj.T is never materialized).
                z2 = inv2 * jax.lax.dot_general(
                    a1, z2c, (((0,), (0,)), ((), ())),
                    preferred_element_type=jnp.float32)
            else:
                z2 = inv2 * jnp.dot(a2, z2c, preferred_element_type=jnp.float32)
            s1 = s1 + c * z1
            s2 = s2 + c * z2

        o_ref[...] = (jnp.maximum(s1, 0.0) + jnp.maximum(s2, 0.0)).astype(o_ref.dtype)

    return kern


def fused_resident_forward(a1, a2, y1, y2, inv1, inv2, b1, b2, coefs, *,
                           with_identity, vmem_limit):
    shared = a2 is None
    n, fout = y1.shape
    kern = _make_resident_kernel(tuple(float(c) for c in coefs),
                                 with_identity, shared)
    operands = [a1] + ([] if shared else [a2]) + [y1, y2, inv1, inv2, b1, b2]
    return pl.pallas_call(
        kern,
        out_shape=jax.ShapeDtypeStruct((n, fout), jnp.float32),
        compiler_params=pltpu.CompilerParams(vmem_limit_bytes=vmem_limit),
    )(*operands)


def _resident_bytes_estimate(n_pad, fout_pad, a_itemsize, shared):
    a_bytes = n_pad * n_pad * a_itemsize * (1 if shared else 2)
    feat_bytes = 9 * n_pad * fout_pad * 4        # y1, y2, out + live f32 temps
    misc = 2 * n_pad * 128 * 4 + 8 * fout_pad * 4 + (1 << 20)
    return a_bytes + feat_bytes + misc


# ---------------------------------------------------------------------------
# Kernel 4 (tiled fallback): one diffusion step  U = inv_deg * (A @ Z)  (or A^T)
#   large (tm, tk) tiles, f32 VMEM accumulator, init/finalize via pl.when.
# ---------------------------------------------------------------------------
def _diffuse_step_kernel(a_ref, z_ref, inv_ref, u_ref, acc_ref, *, transpose_lhs):
    k = pl.program_id(1)

    @pl.when(k == 0)
    def _init():
        acc_ref[...] = jnp.zeros_like(acc_ref)

    a = a_ref[...]
    z = z_ref[...].astype(a.dtype)       # f32 carry, compute-dtype MXU operand
    if transpose_lhs:
        part = jax.lax.dot_general(a, z, (((0,), (0,)), ((), ())),
                                   preferred_element_type=jnp.float32)
    else:
        part = jnp.dot(a, z, preferred_element_type=jnp.float32)
    acc_ref[...] += part

    @pl.when(k == pl.num_programs(1) - 1)
    def _finalize():
        u_ref[...] = (inv_ref[...] * acc_ref[...]).astype(u_ref.dtype)


def diffuse_step(a_masked, z, inv_deg, *, transpose_lhs, vmem_limit,
                 tile_hint=None):
    n = a_masked.shape[0]
    fout = z.shape[1]
    a_bytes = jnp.dtype(a_masked.dtype).itemsize
    pref_tm, pref_tk = (1024, 2048) if tile_hint is None else tile_hint
    tm = _pick_tile(n, pref_tm, 128)
    tk = _pick_tile(n, pref_tk, 128)

    def live(tm_, tk_):
        return (2 * tm_ * tk_ * a_bytes       # A tiles (double-buffered)
                + 2 * tk_ * fout * 4          # Z tiles
                + 2 * tm_ * fout * 4          # output tiles
                + tm_ * fout * 4              # accumulator
                + 2 * tm_ * 128 * 4)          # inv tiles (lane padded)

    budget = int(vmem_limit * 0.8)
    while live(tm, tk) > budget and (tm > 128 or tk > 128):
        if tk >= tm and tk > 128:
            tk = _pick_tile(n, max(tk // 2, 128), 128)
        elif tm > 128:
            tm = _pick_tile(n, max(tm // 2, 128), 128)
        else:
            break

    if transpose_lhs:
        # reads the forward adjacency buffer through a transposed index_map;
        # tm stays large so each strided row run is >= ~2KB.
        a_spec = pl.BlockSpec((tk, tm), lambda i, k: (k, i))
    else:
        a_spec = pl.BlockSpec((tm, tk), lambda i, k: (i, k))

    kern = functools.partial(_diffuse_step_kernel, transpose_lhs=transpose_lhs)
    return pl.pallas_call(
        kern,
        grid=(n // tm, n // tk),
        in_specs=[a_spec,
                  pl.BlockSpec((tk, fout), lambda i, k: (k, 0)),
                  pl.BlockSpec((tm, 1), lambda i, k: (i, 0))],
        out_specs=pl.BlockSpec((tm, fout), lambda i, k: (i, 0)),
        out_shape=jax.ShapeDtypeStruct((n, fout), jnp.float32),
        scratch_shapes=[pltpu.VMEM((tm, fout), jnp.float32)],
        compiler_params=pltpu.CompilerParams(
            dimension_semantics=("parallel", "arbitrary"),
            vmem_limit_bytes=vmem_limit),
    )(a_masked, z, inv_deg)


# ---------------------------------------------------------------------------
# Kernel 5 (tiled fallback): combine  out = relu(b1 + sum_i c_i Z1_i [+ Y1])
#                                         + relu(b2 + sum_i c_i Z2_i [+ Y2])
# ---------------------------------------------------------------------------
def _make_combine_kernel(num_terms, coefs, with_identity):
    def kern(*refs):
        o_ref = refs[-1]
        b_refs = refs[0:2]
        pos = 2
        y_refs = (None, None)
        if with_identity:
            y_refs = refs[2:4]
            pos = 4
        z_refs = (refs[pos:pos + num_terms],
                  refs[pos + num_terms:pos + 2 * num_terms])

        def branch(d):
            s = jnp.zeros(o_ref.shape, jnp.float32) + b_refs[d][...].astype(jnp.float32)
            if with_identity:
                s = s + y_refs[d][...].astype(jnp.float32)
            for c, z_ref in zip(coefs, z_refs[d]):
                s = s + c * z_ref[...].astype(jnp.float32)
            return jnp.maximum(s, 0.0)

        o_ref[...] = (branch(0) + branch(1)).astype(o_ref.dtype)

    return kern


def combine_outputs(b1, b2, y1, y2, z1_list, z2_list, coefs, *,
                    with_identity, vmem_limit, row_tile=512):
    n, fout = z1_list[0].shape
    tm = _pick_tile(n, row_tile, 128)
    bias_spec = pl.BlockSpec((1, fout), lambda i: (0, 0))
    feat_spec = pl.BlockSpec((tm, fout), lambda i: (i, 0))
    operands = [b1, b2]
    in_specs = [bias_spec, bias_spec]
    if with_identity:
        operands += [y1, y2]
        in_specs += [feat_spec, feat_spec]
    operands += list(z1_list) + list(z2_list)
    in_specs += [feat_spec] * (2 * len(z1_list))
    kern = _make_combine_kernel(len(z1_list),
                                tuple(float(c) for c in coefs), with_identity)
    return pl.pallas_call(
        kern,
        grid=(n // tm,),
        in_specs=in_specs,
        out_specs=feat_spec,
        out_shape=jax.ShapeDtypeStruct((n, fout), jnp.float32),
        compiler_params=pltpu.CompilerParams(
            dimension_semantics=("parallel",),
            vmem_limit_bytes=vmem_limit),
    )(*operands)


# ---------------------------------------------------------------------------
# Module wrapper
# ---------------------------------------------------------------------------
class BiSpDiff:
    """Bidirectional sparse-diffusion GNN layer (Pallas TPU forward)."""

    def __init__(self, input_dim, out_dim, alpha=1.0, t=1, remove_self_loop=True,
                 compute_dtype=jnp.bfloat16, key=None,
                 max_resident_bytes=None, tile_hint=None):
        assert t >= 1, "diffusion steps t must be >= 1"
        if key is None:
            key = jax.random.PRNGKey(0)
        self.input_dim = int(input_dim)
        self.out_dim = int(out_dim)
        self.alpha = float(alpha)
        self.t = int(t)
        self.remove_self_loop = bool(remove_self_loop)
        self.compute_dtype = compute_dtype
        self.max_resident_bytes = max_resident_bytes   # None -> auto (VMEM budget)
        self.tile_hint = tile_hint
        # c_i = alpha (1-alpha)^(i-1), i = 1..t   (static, baked into the kernels)
        self.coefs = tuple(self.alpha * (1.0 - self.alpha) ** (i - 1)
                           for i in range(1, self.t + 1))
        # lane-dense padded feature dim (sub-128 out_dim would force masked stores)
        self.fout_pad = _round_up(self.out_dim, 128)

        k1, k2, k3, k4 = jax.random.split(key, 4)
        bound = 1.0 / math.sqrt(input_dim)        # torch nn.Linear default init
        w1 = jax.random.uniform(k1, (out_dim, input_dim), jnp.float32, -bound, bound)
        b1 = jax.random.uniform(k2, (out_dim,), jnp.float32, -bound, bound)
        w2 = jax.random.uniform(k3, (out_dim, input_dim), jnp.float32, -bound, bound)
        b2 = jax.random.uniform(k4, (out_dim,), jnp.float32, -bound, bound)
        pad_f = self.fout_pad - self.out_dim
        # precompute zero-padded W^T and (1, fout_pad) biases once
        self.w1_t = jnp.pad(w1.T, ((0, 0), (0, pad_f)))
        self.w2_t = jnp.pad(w2.T, ((0, 0), (0, pad_f)))
        self.b1 = jnp.pad(b1.reshape(1, -1), ((0, 0), (0, pad_f)))
        self.b2 = jnp.pad(b2.reshape(1, -1), ((0, 0), (0, pad_f)))

    def __call__(self, x, adj1, adj2=None):
        cd = self.compute_dtype
        n = adj1.shape[0]
        n_pad = _round_up(n, 128)
        vmem_limit = _vmem_budget_bytes()

        x = x.astype(jnp.float32)
        if x.shape[-1] != self.input_dim:
            x1, x2 = jnp.split(x, 2, axis=-1)
        else:
            x1 = x2 = x

        def pad_rows(arr):
            return arr if n_pad == n else jnp.pad(arr, ((0, n_pad - n), (0, 0)))

        def pad_adj(a):
            return a if n_pad == n else jnp.pad(a, ((0, n_pad - n), (0, n_pad - n)))

        a1, inv1 = prepare_adjacency(pad_adj(adj1),
                                     remove_self_loop=self.remove_self_loop,
                                     compute_dtype=cd, vmem_limit=vmem_limit)
        if adj2 is None:
            # reverse direction reuses the forward adjacency buffer (A^T product
            # via transposed contraction); deg(A^T) == deg(A) since deg=row+col.
            a2, inv2 = None, inv1
        else:
            a2, inv2 = prepare_adjacency(pad_adj(adj2),
                                         remove_self_loop=self.remove_self_loop,
                                         compute_dtype=cd, vmem_limit=vmem_limit)

        # hoisted feature transform:  K @ x @ W^T == K @ (x @ W^T)
        y1 = linear_transform(pad_rows(x1), self.w1_t, vmem_limit=vmem_limit)
        y2 = linear_transform(pad_rows(x2), self.w2_t, vmem_limit=vmem_limit)

        with_identity = not self.remove_self_loop
        resident_budget = vmem_limit if self.max_resident_bytes is None \
            else min(vmem_limit, int(self.max_resident_bytes))
        est = _resident_bytes_estimate(n_pad, self.fout_pad,
                                       jnp.dtype(cd).itemsize, a2 is None)

        if est <= resident_budget:
            out = fused_resident_forward(a1, a2, y1, y2, inv1, inv2,
                                         self.b1, self.b2, self.coefs,
                                         with_identity=with_identity,
                                         vmem_limit=vmem_limit)
        else:
            def series(a, inv, y, transpose_lhs):
                zs, z = [], y
                for _ in range(self.t):
                    z = diffuse_step(a, z, inv, transpose_lhs=transpose_lhs,
                                     vmem_limit=vmem_limit,
                                     tile_hint=self.tile_hint)
                    zs.append(z)
                return zs

            z1 = series(a1, inv1, y1, False)
            if a2 is None:
                z2 = series(a1, inv2, y2, True)
            else:
                z2 = series(a2, inv2, y2, False)
            out = combine_outputs(self.b1, self.b2, y1, y2, z1, z2, self.coefs,
                                  with_identity=with_identity,
                                  vmem_limit=vmem_limit)
        return out[:n, :self.out_dim]


# ---------------------------------------------------------------------------
# Pure-JAX reference (mirrors the PyTorch module, high-precision matmuls)
# ---------------------------------------------------------------------------
def reference_forward(mod: BiSpDiff, x, adj1, adj2=None):
    hp = jax.lax.Precision.HIGHEST
    if adj2 is None:
        adj2 = adj1.T
    w1_t = mod.w1_t[:, :mod.out_dim]
    w2_t = mod.w2_t[:, :mod.out_dim]
    b1 = mod.b1[:, :mod.out_dim]
    b2 = mod.b2[:, :mod.out_dim]

    def k_matrix(adj):
        a = adj.astype(jnp.float32)
        n = a.shape[0]
        if mod.remove_self_loop:
            a = a * (1.0 - jnp.eye(n, dtype=jnp.float32))
        deg = a.sum(axis=1) + a.sum(axis=0)          # out-degree + in-degree
        inv = jnp.where(deg == 0.0, 0.0, 1.0 / deg)
        p = inv[:, None] * a
        k = (jnp.zeros((n, n), jnp.float32) if mod.remove_self_loop
             else jnp.eye(n, dtype=jnp.float32))
        p_i = p
        for i in range(1, mod.t + 1):
            k = k + mod.alpha * (1.0 - mod.alpha) ** (i - 1) * p_i
            if i < mod.t:
                p_i = jnp.dot(p_i, p, precision=hp)
        return k

    x = x.astype(jnp.float32)
    if x.shape[-1] != mod.input_dim:
        x1, x2 = jnp.split(x, 2, axis=-1)
    else:
        x1 = x2 = x
    o1 = jax.nn.relu(jnp.dot(jnp.dot(k_matrix(adj1), x1, precision=hp),
                             w1_t, precision=hp) + b1)
    o2 = jax.nn.relu(jnp.dot(jnp.dot(k_matrix(adj2), x2, precision=hp),
                             w2_t, precision=hp) + b2)
    return o1 + o2


if __name__ == "__main__":
    key = jax.random.PRNGKey(0)

    configs = [
        # resident fast path, lane-dense fout, remove_self_loop, t=2
        dict(n=512, input_dim=32, out_dim=128, alpha=0.6, t=2,
             remove_self_loop=True, chunked=False, force_tiled=False),
        # padded N (200 -> 256), identity term, chunked x, out_dim < 128 (padded)
        dict(n=200, input_dim=32, out_dim=64, alpha=0.5, t=3,
             remove_self_loop=False, chunked=True, force_tiled=False),
        # forced tiled fallback: multi-tile grid + transposed reverse direction
        dict(n=512, input_dim=32, out_dim=128, alpha=0.6, t=2,
             remove_self_loop=True, chunked=False, force_tiled=True),
    ]

    last_inputs = None
    for cfg in configs:
        key, kx, ka, kp = jax.random.split(key, 4)
        n = cfg["n"]
        feat = cfg["input_dim"] * (2 if cfg["chunked"] else 1)
        x = jax.random.normal(kx, (n, feat), jnp.float32)
        adj = jax.random.bernoulli(ka, 0.35, (n, n)).astype(jnp.float32)
        if not cfg["chunked"]:
            last_inputs = (x, adj, kp)

        for cd, atol, rtol in ((jnp.bfloat16, 1e-2, 5e-2),
                               (jnp.float32, 5e-4, 1e-3)):
            mod = BiSpDiff(cfg["input_dim"], cfg["out_dim"], alpha=cfg["alpha"],
                           t=cfg["t"], remove_self_loop=cfg["remove_self_loop"],
                           compute_dtype=cd, key=kp,
                           max_resident_bytes=(0 if cfg["force_tiled"] else None),
                           tile_hint=((256, 256) if cfg["force_tiled"] else None))
            out = jax.block_until_ready(mod(x, adj))      # adj2 defaults to adj.T
            ref = jax.block_until_ready(reference_forward(mod, x, adj))
            assert out.shape == (n, cfg["out_dim"])
            assert bool(jnp.all(jnp.isfinite(out)))
            max_err = float(jnp.max(jnp.abs(out - ref)))
            assert jnp.allclose(out, ref, atol=atol, rtol=rtol), (
                f"mismatch: cfg={cfg}, dtype={jnp.dtype(cd).name}, "
                f"max_abs_err={max_err}")

    # explicit two-adjacency path (adj2 provided, not None)
    x, adj, kp = last_inputs
    mod = BiSpDiff(32, 128, alpha=0.6, t=2, remove_self_loop=True,
                   compute_dtype=jnp.bfloat16, key=kp)
    out = jax.block_until_ready(mod(x, adj, adj.T))
    ref = jax.block_until_ready(reference_forward(mod, x, adj, adj.T))
    assert jnp.allclose(out, ref, atol=1e-2, rtol=5e-2), "explicit adj2 mismatch"

    print("KERNEL_OK")
</pallas_src>

<mosaic_0001>
module attributes {stable_mosaic.version = 11 : i64} {
  func.func @_prepare_kernel(%arg0: i32, %arg1: memref<512x512xf32, #tpu.memory_space<vmem>>, %arg2: memref<512x512xbf16, #tpu.memory_space<vmem>>, %arg3: memref<512x1xf32, #tpu.memory_space<vmem>>, %arg4: memref<1x1x512xf32, #tpu.memory_space<vmem>>) attributes {dimension_semantics = [#tpu.dimension_semantics<parallel>], iteration_bounds = array<i64: 1>, scalar_prefetch = 0 : i64, scratch_operands = 0 : i64, tpu.core_type = #tpu.core_type<tc>, window_params = [{transform_indices = @transform_0, window_bounds = array<i64: 512, 512>}, {transform_indices = @transform_1, window_bounds = array<i64: 512, 512>}, {transform_indices = @transform_2, window_bounds = array<i64: 512, 1>}, {transform_indices = @transform_3, window_bounds = array<i64: 1, 1, 512>}]} {
    %c0 = arith.constant 0 : index
    %c0_0 = arith.constant 0 : index
    %0 = vector.load %arg1[%c0, %c0_0] : memref<512x512xf32, #tpu.memory_space<vmem>>, vector<512x512xf32>
    %1 = tpu.iota {dimensions = array<i32: 1>} : vector<512x512xi32>
    %c512_i32 = arith.constant 512 : i32
    %2 = arith.muli %arg0, %c512_i32 : i32
    %3 = tpu.iota {dimensions = array<i32: 0>} : vector<512x512xi32>
    %4 = vector.broadcast %2 : i32 to vector<512x512xi32>
    %5 = arith.addi %4, %3 : vector<512x512xi32>
    %6 = arith.cmpi eq, %1, %5 : vector<512x512xi32>
    %cst = arith.constant 0.000000e+00 : f32
    %7 = vector.broadcast %cst : f32 to vector<512x512xf32>
    %8 = arith.select %6, %7, %0 : vector<512x512xi1>, vector<512x512xf32>
    %9 = arith.truncf %8 : vector<512x512xf32> to vector<512x512xbf16>
    %c0_1 = arith.constant 0 : index
    %c0_2 = arith.constant 0 : index
    %10 = vector.load %arg2[%c0_1, %c0_2] : memref<512x512xbf16, #tpu.memory_space<vmem>>, vector<512x512xbf16>
    tpu.vector_store %arg2[%c0_1, %c0_2], %9 {strides = array<i32>} : memref<512x512xbf16, #tpu.memory_space<vmem>>, vector<512x512xbf16>,
    %cst_3 = arith.constant dense<0.000000e+00> : vector<512xf32>
    %11 = vector.multi_reduction <add>, %8, %cst_3 [1] : vector<512x512xf32> to vector<512xf32>
    %12 = vector.shape_cast %11 : vector<512xf32> to vector<512x1xf32>
    %c0_4 = arith.constant 0 : index
    %c0_5 = arith.constant 0 : index
    %13 = vector.load %arg3[%c0_4, %c0_5] : memref<512x1xf32, #tpu.memory_space<vmem>>, vector<512x1xf32>
    tpu.vector_store %arg3[%c0_4, %c0_5], %12 {strides = array<i32>} : memref<512x1xf32, #tpu.memory_space<vmem>>, vector<512x1xf32>,
    %cst_6 = arith.constant dense<0.000000e+00> : vector<512xf32>
    %14 = vector.multi_reduction <add>, %8, %cst_6 [0] : vector<512x512xf32> to vector<512xf32>
    %15 = vector.shape_cast %14 : vector<512xf32> to vector<1x512xf32>
    %16 = vector.shape_cast %15 : vector<1x512xf32> to vector<1x1x512xf32>
    %c0_7 = arith.constant 0 : index
    %c0_8 = arith.constant 0 : index
    %c0_9 = arith.constant 0 : index
    %17 = vector.load %arg4[%c0_7, %c0_8, %c0_9] : memref<1x1x512xf32, #tpu.memory_space<vmem>>, vector<1x1x512xf32>
    tpu.vector_store %arg4[%c0_7, %c0_8, %c0_9], %16 {strides = array<i32>} : memref<1x1x512xf32, #tpu.memory_space<vmem>>, vector<1x1x512xf32>,
    return
  }
  func.func @transform_0(%arg0: i32) -> (i32, i32) {
    %c0_i32 = arith.constant 0 : i32
    %c0_i32_0 = arith.constant 0 : i32
    return %arg0, %c0_i32 : i32, i32
  }
  func.func @transform_1(%arg0: i32) -> (i32, i32) {
    %c0_i32 = arith.constant 0 : i32
    %c0_i32_0 = arith.constant 0 : i32
    return %arg0, %c0_i32 : i32, i32
  }
  func.func @transform_2(%arg0: i32) -> (i32, i32) {
    %c0_i32 = arith.constant 0 : i32
    %c0_i32_0 = arith.constant 0 : i32
    return %arg0, %c0_i32 : i32, i32
  }
  func.func @transform_3(%arg0: i32) -> (i32, i32, i32) {
    %c0_i32 = arith.constant 0 : i32
    %c0_i32_0 = arith.constant 0 : i32
    %c0_i32_1 = arith.constant 0 : i32
    return %arg0, %c0_i32, %c0_i32_0 : i32, i32, i32
  }
}

</mosaic_0001>

<llo_original>
// kernel: tpu_custom_call.1
$region0: #{tpu_custom_call.1}
  #allocation0 [shape = 'u32[]', space=smem, size = 0x4, offset = 0x4, fixed_abs, tag = 'smem constant byte address 0x4 - core index']
  #allocation1 [shape = 'u32[144,128]{1,0:T(1,128)}', space=vmem, size = 0x12000, scoped, tag = 'internal scratch']
  %s0 = inlined_call_operand.hbm [shape: f32[512,512], index: 0, kind: input, shape index: {}]
  %s1 = inlined_call_operand.hbm [shape: bf16[512,512], index: 1, kind: output, shape index: {0}]
  %s2 = inlined_call_operand.vmem [shape: f32[512,1], index: 2, kind: output, shape index: {1}]
  %s3 = inlined_call_operand.hbm [shape: f32[1,1,512], index: 3, kind: output, shape index: {2}]
  %4 = xla_tuple %s1, %s2, %s3
  %s5 = sld [smem:[#allocation0]]
  $region34: #{tpu_custom_call.1} parent=0
    _
  %s7 = ssub.s32 1, %s5
  %s8 = scalar_select 0, %s7, %s5
  $region1: #{tpu_custom_call.1} parent=0
    #allocation2 [shape = 'u8[1048576]{0}', space=vmem, size = 0x100000, scoped, tag = 'input window, operand 0, single buffered']
    #allocation3 [shape = 's32[1]{0}', space=sflag, size = 0x4, scoped, tag = 'scoped memory for tpu_custom_call.1']
    #allocation4 [shape = 's32[1]{0}', space=sflag, size = 0x4, scoped, tag = 'scoped memory for tpu_custom_call.1']
    #allocation5 [shape = 'u8[524288]{0}', space=vmem, size = 0x80000, scoped, tag = 'output window, operand 0, single buffered']
    #allocation6 [shape = 'u8[2048]{0}', space=vmem, size = 0x800, scoped, tag = 'output window, operand 2, single buffered']
    #allocation7 [shape = 's32[1]{0}', space=sflag, size = 0x4, scoped, tag = 'scoped memory for tpu_custom_call.1']
    %9 = vsyncpa [#allocation3], 0
    %10 = vsyncpa [#allocation4], 0
    %11 = vsyncpa [#allocation7], 0
    // Predicated region
    $region2: #{tpu_custom_call.1} parent=1 // pred_check
      _
    $region3: #{tpu_custom_call.1} parent=1 // pred_check_branch
      %13 = sbr.rel (0) target = $region5
    $region4: #{tpu_custom_call.1} parent=1 // pred_region
      %s15 = ssub.s32 32768, 32768
      %16 = vsyncadd [#allocation3], %s15
      %s17 = sshll.u32 [#allocation2], 4
      %s18 = int_to_ptr.vmem [resolvable:$true] %s17
      %23 = dma.hbm_to_vmem [thread:$0]  %s0, 32768, %s18, [#allocation3], 512, 512, 32
    $region5: #{tpu_custom_call.1} parent=1 // pred_fallthru
      _
    // Predicated region
    $region6: #{tpu_custom_call.1} parent=1 // pred_check
      _
    $region7: #{tpu_custom_call.1} parent=1 // pred_check_branch
      %25 = sbr.rel (0) target = $region9
    $region8: #{tpu_custom_call.1} parent=1 // pred_region
      %26 = dma.done [#allocation3], 32768
    $region9: #{tpu_custom_call.1} parent=1 // pred_fallthru
      _
    %v27 = vld [vmem:[#allocation2] sm:$0xff]
    %v28 = vld [vmem:[#allocation2 + $0x8] sm:$0xff]
    %v29 = vld [vmem:[#allocation2 + $0x10] sm:$0xff]
    %v30 = vld [vmem:[#allocation2 + $0x18] sm:$0xff]
    %v31 = vld [vmem:[#allocation2 + $0x20] sm:$0xff]
    %v32 = vld [vmem:[#allocation2 + $0x28] sm:$0xff]
    %v33 = vld [vmem:[#allocation2 + $0x30] sm:$0xff]
    %v34 = vld [vmem:[#allocation2 + $0x38] sm:$0xff]
    %v35 = vld [vmem:[#allocation2 + $0x40] sm:$0xff]
    %v36 = vld [vmem:[#allocation2 + $0x48] sm:$0xff]
    %v37 = vld [vmem:[#allocation2 + $0x50] sm:$0xff]
    %v38 = vld [vmem:[#allocation2 + $0x58] sm:$0xff]
    %v39 = vld [vmem:[#allocation2 + $0x60] sm:$0xff]
    %v40 = vld [vmem:[#allocation2 + $0x68] sm:$0xff]
    %v41 = vld [vmem:[#allocation2 + $0x70] sm:$0xff]
    %v42 = vld [vmem:[#allocation2 + $0x78] sm:$0xff]
    %v43 = vld [vmem:[#allocation2 + $0x80] sm:$0xff]
    %v44 = vld [vmem:[#allocation2 + $0x88] sm:$0xff]
    %v45 = vld [vmem:[#allocation2 + $0x90] sm:$0xff]
    %v46 = vld [vmem:[#allocation2 + $0x98] sm:$0xff]
    %v47 = vld [vmem:[#allocation2 + $0xa0] sm:$0xff]
    %v48 = vld [vmem:[#allocation2 + $0xa8] sm:$0xff]
    %v49 = vld [vmem:[#allocation2 + $0xb0] sm:$0xff]
    %v50 = vld [vmem:[#allocation2 + $0xb8] sm:$0xff]
    %v51 = vld [vmem:[#allocation2 + $0xc0] sm:$0xff]
    %v52 = vld [vmem:[#allocation2 + $0xc8] sm:$0xff]
    %v53 = vld [vmem:[#allocation2 + $0xd0] sm:$0xff]
    %v54 = vld [vmem:[#allocation2 + $0xd8] sm:$0xff]
    %v55 = vld [vmem:[#allocation2 + $0xe0] sm:$0xff]
    %v56 = vld [vmem:[#allocation2 + $0xe8] sm:$0xff]
    %v57 = vld [vmem:[#allocation2 + $0xf0] sm:$0xff]
    %v58 = vld [vmem:[#allocation2 + $0xf8] sm:$0xff]
    %v59 = vld [vmem:[#allocation2 + $0x100] sm:$0xff]
    %v60 = vld [vmem:[#allocation2 + $0x108] sm:$0xff]
    %v61 = vld [vmem:[#allocation2 + $0x110] sm:$0xff]
    %v62 = vld [vmem:[#allocation2 + $0x118] sm:$0xff]
    %v63 = vld [vmem:[#allocation2 + $0x120] sm:$0xff]
    %v64 = vld [vmem:[#allocation2 + $0x128] sm:$0xff]
    %v65 = vld [vmem:[#allocation2 + $0x130] sm:$0xff]
    %v66 = vld [vmem:[#allocation2 + $0x138] sm:$0xff]
    %v67 = vld [vmem:[#allocation2 + $0x140] sm:$0xff]
    %v68 = vld [vmem:[#allocation2 + $0x148] sm:$0xff]
    %v69 = vld [vmem:[#allocation2 + $0x150] sm:$0xff]
    %v70 = vld [vmem:[#allocation2 + $0x158] sm:$0xff]
    %v71 = vld [vmem:[#allocation2 + $0x160] sm:$0xff]
    %v72 = vld [vmem:[#allocation2 + $0x168] sm:$0xff]
    %v73 = vld [vmem:[#allocation2 + $0x170] sm:$0xff]
    %v74 = vld [vmem:[#allocation2 + $0x178] sm:$0xff]
    %v75 = vld [vmem:[#allocation2 + $0x180] sm:$0xff]
    %v76 = vld [vmem:[#allocation2 + $0x188] sm:$0xff]
    %v77 = vld [vmem:[#allocation2 + $0x190] sm:$0xff]
    %v78 = vld [vmem:[#allocation2 + $0x198] sm:$0xff]
    %v79 = vld [vmem:[#allocation2 + $0x1a0] sm:$0xff]
    %v80 = vld [vmem:[#allocation2 + $0x1a8] sm:$0xff]
    %v81 = vld [vmem:[#allocation2 + $0x1b0] sm:$0xff]
    %v82 = vld [vmem:[#allocation2 + $0x1b8] sm:$0xff]
    %v83 = vld [vmem:[#allocation2 + $0x1c0] sm:$0xff]
    %v84 = vld [vmem:[#allocation2 + $0x1c8] sm:$0xff]
    %v85 = vld [vmem:[#allocation2 + $0x1d0] sm:$0xff]
    %v86 = vld [vmem:[#allocation2 + $0x1d8] sm:$0xff]
    %v87 = vld [vmem:[#allocation2 + $0x1e0] sm:$0xff]
    %v88 = vld [vmem:[#allocation2 + $0x1e8] sm:$0xff]
    %v89 = vld [vmem:[#allocation2 + $0x1f0] sm:$0xff]
    %v90 = vld [vmem:[#allocation2 + $0x1f8] sm:$0xff]
    %v91 = vld [vmem:[#allocation2 + $0x200] sm:$0xff]
    %v92 = vld [vmem:[#allocation2 + $0x208] sm:$0xff]
    %v93 = vld [vmem:[#allocation2 + $0x210] sm:$0xff]
    %v94 = vld [vmem:[#allocation2 + $0x218] sm:$0xff]
    %v95 = vld [vmem:[#allocation2 + $0x220] sm:$0xff]
    %v96 = vld [vmem:[#allocation2 + $0x228] sm:$0xff]
    %v97 = vld [vmem:[#allocation2 + $0x230] sm:$0xff]
    %v98 = vld [vmem:[#allocation2 + $0x238] sm:$0xff]
    %v99 = vld [vmem:[#allocation2 + $0x240] sm:$0xff]
    %v100 = vld [vmem:[#allocation2 + $0x248] sm:$0xff]
    %v101 = vld [vmem:[#allocation2 + $0x250] sm:$0xff]
    %v102 = vld [vmem:[#allocation2 + $0x258] sm:$0xff]
    %v103 = vld [vmem:[#allocation2 + $0x260] sm:$0xff]
    %v104 = vld [vmem:[#allocation2 + $0x268] sm:$0xff]
    %v105 = vld [vmem:[#allocation2 + $0x270] sm:$0xff]
    %v106 = vld [vmem:[#allocation2 + $0x278] sm:$0xff]
    %v107 = vld [vmem:[#allocation2 + $0x280] sm:$0xff]
    %v108 = vld [vmem:[#allocation2 + $0x288] sm:$0xff]
    %v109 = vld [vmem:[#allocation2 + $0x290] sm:$0xff]
    %v110 = vld [vmem:[#allocation2 + $0x298] sm:$0xff]
    %v111 = vld [vmem:[#allocation2 + $0x2a0] sm:$0xff]
    %v112 = vld [vmem:[#allocation2 + $0x2a8] sm:$0xff]
    %v113 = vld [vmem:[#allocation2 + $0x2b0] sm:$0xff]
    %v114 = vld [vmem:[#allocation2 + $0x2b8] sm:$0xff]
    %v115 = vld [vmem:[#allocation2 + $0x2c0] sm:$0xff]
    %v116 = vld [vmem:[#allocation2 + $0x2c8] sm:$0xff]
    %v117 = vld [vmem:[#allocation2 + $0x2d0] sm:$0xff]
    %v118 = vld [vmem:[#allocation2 + $0x2d8] sm:$0xff]
    %v119 = vld [vmem:[#allocation2 + $0x2e0] sm:$0xff]
    %v120 = vld [vmem:[#allocation2 + $0x2e8] sm:$0xff]
    %v121 = vld [vmem:[#allocation2 + $0x2f0] sm:$0xff]
    %v122 = vld [vmem:[#allocation2 + $0x2f8] sm:$0xff]
    %v123 = vld [vmem:[#allocation2 + $0x300] sm:$0xff]
    %v124 = vld [vmem:[#allocation2 + $0x308] sm:$0xff]
    %v125 = vld [vmem:[#allocation2 + $0x310] sm:$0xff]
    %v126 = vld [vmem:[#allocation2 + $0x318] sm:$0xff]
    %v127 = vld [vmem:[#allocation2 + $0x320] sm:$0xff]
    %v128 = vld [vmem:[#allocation2 + $0x328] sm:$0xff]
    %v129 = vld [vmem:[#allocation2 + $0x330] sm:$0xff]
    %v130 = vld [vmem:[#allocation2 + $0x338] sm:$0xff]
    %v131 = vld [vmem:[#allocation2 + $0x340] sm:$0xff]
    %v132 = vld [vmem:[#allocation2 + $0x348] sm:$0xff]
    %v133 = vld [vmem:[#allocation2 + $0x350] sm:$0xff]
    %v134 = vld [vmem:[#allocation2 + $0x358] sm:$0xff]
    %v135 = vld [vmem:[#allocation2 + $0x360] sm:$0xff]
    %v136 = vld [vmem:[#allocation2 + $0x368] sm:$0xff]
    %v137 = vld [vmem:[#allocation2 + $0x370] sm:$0xff]
    %v138 = vld [vmem:[#allocation2 + $0x378] sm:$0xff]
    %v139 = vld [vmem:[#allocation2 + $0x380] sm:$0xff]
    %v140 = vld [vmem:[#allocation2 + $0x388] sm:$0xff]
    %v141 = vld [vmem:[#allocation2 + $0x390] sm:$0xff]
    %v142 = vld [vmem:[#allocation2 + $0x398] sm:$0xff]
    %v143 = vld [vmem:[#allocation2 + $0x3a0] sm:$0xff]
    %v144 = vld [vmem:[#allocation2 + $0x3a8] sm:$0xff]
    %v145 = vld [vmem:[#allocation2 + $0x3b0] sm:$0xff]
    %v146 = vld [vmem:[#allocation2 + $0x3b8] sm:$0xff]
    %v147 = vld [vmem:[#allocation2 + $0x3c0] sm:$0xff]
    %v148 = vld [vmem:[#allocation2 + $0x3c8] sm:$0xff]
    %v149 = vld [vmem:[#allocation2 + $0x3d0] sm:$0xff]
    %v150 = vld [vmem:[#allocation2 + $0x3d8] sm:$0xff]
    %v151 = vld [vmem:[#allocation2 + $0x3e0] sm:$0xff]
    %v152 = vld [vmem:[#allocation2 + $0x3e8] sm:$0xff]
    %v153 = vld [vmem:[#allocation2 + $0x3f0] sm:$0xff]
    %v154 = vld [vmem:[#allocation2 + $0x3f8] sm:$0xff]
    %v155 = vld [vmem:[#allocation2 + $0x400] sm:$0xff]
    %v156 = vld [vmem:[#allocation2 + $0x408] sm:$0xff]
    %v157 = vld [vmem:[#allocation2 + $0x410] sm:$0xff]
    %v158 = vld [vmem:[#allocation2 + $0x418] sm:$0xff]
    %v159 = vld [vmem:[#allocation2 + $0x420] sm:$0xff]
    %v160 = vld [vmem:[#allocation2 + $0x428] sm:$0xff]
    %v161 = vld [vmem:[#allocation2 + $0x430] sm:$0xff]
    %v162 = vld [vmem:[#allocation2 + $0x438] sm:$0xff]
    %v163 = vld [vmem:[#allocation2 + $0x440] sm:$0xff]
    %v164 = vld [vmem:[#allocation2 + $0x448] sm:$0xff]
    %v165 = vld [vmem:[#allocation2 + $0x450] sm:$0xff]
    %v166 = vld [vmem:[#allocation2 + $0x458] sm:$0xff]
    %v167 = vld [vmem:[#allocation2 + $0x460] sm:$0xff]
    %v168 = vld [vmem:[#allocation2 + $0x468] sm:$0xff]
    %v169 = vld [vmem:[#allocation2 + $0x470] sm:$0xff]
    %v170 = vld [vmem:[#allocation2 + $0x478] sm:$0xff]
    %v171 = vld [vmem:[#allocation2 + $0x480] sm:$0xff]
    %v172 = vld [vmem:[#allocation2 + $0x488] sm:$0xff]
    %v173 = vld [vmem:[#allocation2 + $0x490] sm:$0xff]
    %v174 = vld [vmem:[#allocation2 + $0x498] sm:$0xff]
    %v175 = vld [vmem:[#allocation2 + $0x4a0] sm:$0xff]
    %v176 = vld [vmem:[#allocation2 + $0x4a8] sm:$0xff]
    %v177 = vld [vmem:[#allocation2 + $0x4b0] sm:$0xff]
    %v178 = vld [vmem:[#allocation2 + $0x4b8] sm:$0xff]
    %v179 = vld [vmem:[#allocation2 + $0x4c0] sm:$0xff]
    %v180 = vld [vmem:[#allocation2 + $0x4c8] sm:$0xff]
    %v181 = vld [vmem:[#allocation2 + $0x4d0] sm:$0xff]
    %v182 = vld [vmem:[#allocation2 + $0x4d8] sm:$0xff]
    %v183 = vld [vmem:[#allocation2 + $0x4e0] sm:$0xff]
    %v184 = vld [vmem:[#allocation2 + $0x4e8] sm:$0xff]
    %v185 = vld [vmem:[#allocation2 + $0x4f0] sm:$0xff]
    %v186 = vld [vmem:[#allocation2 + $0x4f8] sm:$0xff]
    %v187 = vld [vmem:[#allocation2 + $0x500] sm:$0xff]
    %v188 = vld [vmem:[#allocation2 + $0x508] sm:$0xff]
    %v189 = vld [vmem:[#allocation2 + $0x510] sm:$0xff]
    %v190 = vld [vmem:[#allocation2 + $0x518] sm:$0xff]
    %v191 = vld [vmem:[#allocation2 + $0x520] sm:$0xff]
    %v192 = vld [vmem:[#allocation2 + $0x528] sm:$0xff]
    %v193 = vld [vmem:[#allocation2 + $0x530] sm:$0xff]
    %v194 = vld [vmem:[#allocation2 + $0x538] sm:$0xff]
    %v195 = vld [vmem:[#allocation2 + $0x540] sm:$0xff]
    %v196 = vld [vmem:[#allocation2 + $0x548] sm:$0xff]
    %v197 = vld [vmem:[#allocation2 + $0x550] sm:$0xff]
    %v198 = vld [vmem:[#allocation2 + $0x558] sm:$0xff]
    %v199 = vld [vmem:[#allocation2 + $0x560] sm:$0xff]
    %v200 = vld [vmem:[#allocation2 + $0x568] sm:$0xff]
    %v201 = vld [vmem:[#allocation2 + $0x570] sm:$0xff]
    %v202 = vld [vmem:[#allocation2 + $0x578] sm:$0xff]
    %v203 = vld [vmem:[#allocation2 + $0x580] sm:$0xff]
    %v204 = vld [vmem:[#allocation2 + $0x588] sm:$0xff]
    %v205 = vld [vmem:[#allocation2 + $0x590] sm:$0xff]
    %v206 = vld [vmem:[#allocation2 + $0x598] sm:$0xff]
    %v207 = vld [vmem:[#allocation2 + $0x5a0] sm:$0xff]
    %v208 = vld [vmem:[#allocation2 + $0x5a8] sm:$0xff]
    %v209 = vld [vmem:[#allocation2 + $0x5b0] sm:$0xff]
    %v210 = vld [vmem:[#allocation2 + $0x5b8] sm:$0xff]
    %v211 = vld [vmem:[#allocation2 + $0x5c0] sm:$0xff]
    %v212 = vld [vmem:[#allocation2 + $0x5c8] sm:$0xff]
    %v213 = vld [vmem:[#allocation2 + $0x5d0] sm:$0xff]
    %v214 = vld [vmem:[#allocation2 + $0x5d8] sm:$0xff]
    %v215 = vld [vmem:[#allocation2 + $0x5e0] sm:$0xff]
    %v216 = vld [vmem:[#allocation2 + $0x5e8] sm:$0xff]
    %v217 = vld [vmem:[#allocation2 + $0x5f0] sm:$0xff]
    %v218 = vld [vmem:[#allocation2 + $0x5f8] sm:$0xff]
    %v219 = vld [vmem:[#allocation2 + $0x600] sm:$0xff]
    %v220 = vld [vmem:[#allocation2 + $0x608] sm:$0xff]
    %v221 = vld [vmem:[#allocation2 + $0x610] sm:$0xff]
    %v222 = vld [vmem:[#allocation2 + $0x618] sm:$0xff]
    %v223 = vld [vmem:[#allocation2 + $0x620] sm:$0xff]
    %v224 = vld [vmem:[#allocation2 + $0x628] sm:$0xff]
    %v225 = vld [vmem:[#allocation2 + $0x630] sm:$0xff]
    %v226 = vld [vmem:[#allocation2 + $0x638] sm:$0xff]
    %v227 = vld [vmem:[#allocation2 + $0x640] sm:$0xff]
    %v228 = vld [vmem:[#allocation2 + $0x648] sm:$0xff]
    %v229 = vld [vmem:[#allocation2 + $0x650] sm:$0xff]
    %v230 = vld [vmem:[#allocation2 + $0x658] sm:$0xff]
    %v231 = vld [vmem:[#allocation2 + $0x660] sm:$0xff]
    %v232 = vld [vmem:[#allocation2 + $0x668] sm:$0xff]
    %v233 = vld [vmem:[#allocation2 + $0x670] sm:$0xff]
    %v234 = vld [vmem:[#allocation2 + $0x678] sm:$0xff]
    %v235 = vld [vmem:[#allocation2 + $0x680] sm:$0xff]
    %v236 = vld [vmem:[#allocation2 + $0x688] sm:$0xff]
    %v237 = vld [vmem:[#allocation2 + $0x690] sm:$0xff]
    %v238 = vld [vmem:[#allocation2 + $0x698] sm:$0xff]
    %v239 = vld [vmem:[#allocation2 + $0x6a0] sm:$0xff]
    %v240 = vld [vmem:[#allocation2 + $0x6a8] sm:$0xff]
    %v241 = vld [vmem:[#allocation2 + $0x6b0] sm:$0xff]
    %v242 = vld [vmem:[#allocation2 + $0x6b8] sm:$0xff]
    %v243 = vld [vmem:[#allocation2 + $0x6c0] sm:$0xff]
    %v244 = vld [vmem:[#allocation2 + $0x6c8] sm:$0xff]
    %v245 = vld [vmem:[#allocation2 + $0x6d0] sm:$0xff]
    %v246 = vld [vmem:[#allocation2 + $0x6d8] sm:$0xff]
    %v247 = vld [vmem:[#allocation2 + $0x6e0] sm:$0xff]
    %v248 = vld [vmem:[#allocation2 + $0x6e8] sm:$0xff]
    %v249 = vld [vmem:[#allocation2 + $0x6f0] sm:$0xff]
    %v250 = vld [vmem:[#allocation2 + $0x6f8] sm:$0xff]
    %v251 = vld [vmem:[#allocation2 + $0x700] sm:$0xff]
    %v252 = vld [vmem:[#allocation2 + $0x708] sm:$0xff]
    %v253 = vld [vmem:[#allocation2 + $0x710] sm:$0xff]
    %v254 = vld [vmem:[#allocation2 + $0x718] sm:$0xff]
    %v255 = vld [vmem:[#allocation2 + $0x720] sm:$0xff]
    %v256 = vld [vmem:[#allocation2 + $0x728] sm:$0xff]
    %v257 = vld [vmem:[#allocation2 + $0x730] sm:$0xff]
    %v258 = vld [vmem:[#allocation2 + $0x738] sm:$0xff]
    %v259 = vld [vmem:[#allocation2 + $0x740] sm:$0xff]
    %v260 = vld [vmem:[#allocation2 + $0x748] sm:$0xff]
    %v261 = vld [vmem:[#allocation2 + $0x750] sm:$0xff]
    %v262 = vld [vmem:[#allocation2 + $0x758] sm:$0xff]
    %v263 = vld [vmem:[#allocation2 + $0x760] sm:$0xff]
    %v264 = vld [vmem:[#allocation2 + $0x768] sm:$0xff]
    %v265 = vld [vmem:[#allocation2 + $0x770] sm:$0xff]
    %v266 = vld [vmem:[#allocation2 + $0x778] sm:$0xff]
    %v267 = vld [vmem:[#allocation2 + $0x780] sm:$0xff]
    %v268 = vld [vmem:[#allocation2 + $0x788] sm:$0xff]
    %v269 = vld [vmem:[#allocation2 + $0x790] sm:$0xff]
    %v270 = vld [vmem:[#allocation2 + $0x798] sm:$0xff]
    %v271 = vld [vmem:[#allocation2 + $0x7a0] sm:$0xff]
    %v272 = vld [vmem:[#allocation2 + $0x7a8] sm:$0xff]
    %v273 = vld [vmem:[#allocation2 + $0x7b0] sm:$0xff]
    %v274 = vld [vmem:[#allocation2 + $0x7b8] sm:$0xff]
    %v275 = vld [vmem:[#allocation2 + $0x7c0] sm:$0xff]
    %v276 = vld [vmem:[#allocation2 + $0x7c8] sm:$0xff]
    %v277 = vld [vmem:[#allocation2 + $0x7d0] sm:$0xff]
    %v278 = vld [vmem:[#allocation2 + $0x7d8] sm:$0xff]
    %v279 = vld [vmem:[#allocation2 + $0x7e0] sm:$0xff]
    %v280 = vld [vmem:[#allocation2 + $0x7e8] sm:$0xff]
    %v281 = vld [vmem:[#allocation2 + $0x7f0] sm:$0xff]
    %v282 = vld [vmem:[#allocation2 + $0x7f8] sm:$0xff]
    %v283 = vlaneseq
    %v284 = vand.u32 %v283, 127
    %v285 = vadd.s32 %v284, 128
    %v286 = vadd.s32 %v284, 256
    %v287 = vadd.s32 %v284, 384
    %s288 = smul.u32 0, 512
    %v289 = vlaneseq
    %v290 = vshrl.u32 %v289, 7
    %v291 = vadd.s32 %v290, 8
    %v292 = vadd.s32 %v290, 16
    %v293 = vadd.s32 %v290, 24
    %v294 = vadd.s32 %v290, 32
    %v295 = vadd.s32 %v290, 40
    %v296 = vadd.s32 %v290, 48
    %v297 = vadd.s32 %v290, 56
    %v298 = vadd.s32 %v290, 64
    %v299 = vadd.s32 %v290, 72
    %v300 = vadd.s32 %v290, 80
    %v301 = vadd.s32 %v290, 88
    %v302 = vadd.s32 %v290, 96
    %v303 = vadd.s32 %v290, 104
    %v304 = vadd.s32 %v290, 112
    %v305 = vadd.s32 %v290, 120
    %v306 = vadd.s32 %v290, 128
    %v307 = vadd.s32 %v290, 136
    %v308 = vadd.s32 %v290, 144
    %v309 = vadd.s32 %v290, 152
    %v310 = vadd.s32 %v290, 160
    %v311 = vadd.s32 %v290, 168
    %v312 = vadd.s32 %v290, 176
    %v313 = vadd.s32 %v290, 184
    %v314 = vadd.s32 %v290, 192
    %v315 = vadd.s32 %v290, 200
    %v316 = vadd.s32 %v290, 208
    %v317 = vadd.s32 %v290, 216
    %v318 = vadd.s32 %v290, 224
    %v319 = vadd.s32 %v290, 232
    %v320 = vadd.s32 %v290, 240
    %v321 = vadd.s32 %v290, 248
    %v322 = vadd.s32 %v290, 256
    %v323 = vadd.s32 %v290, 264
    %v324 = vadd.s32 %v290, 272
    %v325 = vadd.s32 %v290, 280
    %v326 = vadd.s32 %v290, 288
    %v327 = vadd.s32 %v290, 296
    %v328 = vadd.s32 %v290, 304
    %v329 = vadd.s32 %v290, 312
    %v330 = vadd.s32 %v290, 320
    %v331 = vadd.s32 %v290, 328
    %v332 = vadd.s32 %v290, 336
    %v333 = vadd.s32 %v290, 344
    %v334 = vadd.s32 %v290, 352
    %v335 = vadd.s32 %v290, 360
    %v336 = vadd.s32 %v290, 368
    %v337 = vadd.s32 %v290, 376
    %v338 = vadd.s32 %v290, 384
    %v339 = vadd.s32 %v290, 392
    %v340 = vadd.s32 %v290, 400
    %v341 = vadd.s32 %v290, 408
    %v342 = vadd.s32 %v290, 416
    %v343 = vadd.s32 %v290, 424
    %v344 = vadd.s32 %v290, 432
    %v345 = vadd.s32 %v290, 440
    %v346 = vadd.s32 %v290, 448
    %v347 = vadd.s32 %v290, 456
    %v348 = vadd.s32 %v290, 464
    %v349 = vadd.s32 %v290, 472
    %v350 = vadd.s32 %v290, 480
    %v351 = vadd.s32 %v290, 488
    %v352 = vadd.s32 %v290, 496
    %v353 = vadd.s32 %v290, 504
    %v354 = vstv %s288
    %v355 = vadd.s32 %v354, %v290
    %v356 = vadd.s32 %v354, %v291
    %v357 = vadd.s32 %v354, %v292
    %v358 = vadd.s32 %v354, %v293
    %v359 = vadd.s32 %v354, %v294
    %v360 = vadd.s32 %v354, %v295
    %v361 = vadd.s32 %v354, %v296
    %v362 = vadd.s32 %v354, %v297
    %v363 = vadd.s32 %v354, %v298
    %v364 = vadd.s32 %v354, %v299
    %v365 = vadd.s32 %v354, %v300
    %v366 = vadd.s32 %v354, %v301
    %v367 = vadd.s32 %v354, %v302
    %v368 = vadd.s32 %v354, %v303
    %v369 = vadd.s32 %v354, %v304
    %v370 = vadd.s32 %v354, %v305
    %v371 = vadd.s32 %v354, %v306
    %v372 = vadd.s32 %v354, %v307
    %v373 = vadd.s32 %v354, %v308
    %v374 = vadd.s32 %v354, %v309
    %v375 = vadd.s32 %v354, %v310
    %v376 = vadd.s32 %v354, %v311
    %v377 = vadd.s32 %v354, %v312
    %v378 = vadd.s32 %v354, %v313
    %v379 = vadd.s32 %v354, %v314
    %v380 = vadd.s32 %v354, %v315
    %v381 = vadd.s32 %v354, %v316
    %v382 = vadd.s32 %v354, %v317
    %v383 = vadd.s32 %v354, %v318
    %v384 = vadd.s32 %v354, %v319
    %v385 = vadd.s32 %v354, %v320
    %v386 = vadd.s32 %v354, %v321
    %v387 = vadd.s32 %v354, %v322
    %v388 = vadd.s32 %v354, %v323
    %v389 = vadd.s32 %v354, %v324
    %v390 = vadd.s32 %v354, %v325
    %v391 = vadd.s32 %v354, %v326
    %v392 = vadd.s32 %v354, %v327
    %v393 = vadd.s32 %v354, %v328
    %v394 = vadd.s32 %v354, %v329
    %v395 = vadd.s32 %v354, %v330
    %v396 = vadd.s32 %v354, %v331
    %v397 = vadd.s32 %v354, %v332
    %v398 = vadd.s32 %v354, %v333
    %v399 = vadd.s32 %v354, %v334
    %v400 = vadd.s32 %v354, %v335
    %v401 = vadd.s32 %v354, %v336
    %v402 = vadd.s32 %v354, %v337
    %v403 = vadd.s32 %v354, %v338
    %v404 = vadd.s32 %v354, %v339
    %v405 = vadd.s32 %v354, %v340
    %v406 = vadd.s32 %v354, %v341
    %v407 = vadd.s32 %v354, %v342
    %v408 = vadd.s32 %v354, %v343
    %v409 = vadd.s32 %v354, %v344
    %v410 = vadd.s32 %v354, %v345
    %v411 = vadd.s32 %v354, %v346
    %v412 = vadd.s32 %v354, %v347
    %v413 = vadd.s32 %v354, %v348
    %v414 = vadd.s32 %v354, %v349
    %v415 = vadd.s32 %v354, %v350
    %v416 = vadd.s32 %v354, %v351
    %v417 = vadd.s32 %v354, %v352
    %v418 = vadd.s32 %v354, %v353
    %vm419 = vcmp.eq.s32.totalorder %v284, %v355
    %vm420 = vcmp.eq.s32.totalorder %v285, %v355
    %vm421 = vcmp.eq.s32.totalorder %v286, %v355
    %vm422 = vcmp.eq.s32.totalorder %v287, %v355
    %vm423 = vcmp.eq.s32.totalorder %v284, %v356
    %vm424 = vcmp.eq.s32.totalorder %v285, %v356
    %vm425 = vcmp.eq.s32.totalorder %v286, %v356
    %vm426 = vcmp.eq.s32.totalorder %v287, %v356
    %vm427 = vcmp.eq.s32.totalorder %v284, %v357
    %vm428 = vcmp.eq.s32.totalorder %v285, %v357
    %vm429 = vcmp.eq.s32.totalorder %v286, %v357
    %vm430 = vcmp.eq.s32.totalorder %v287, %v357
    %vm431 = vcmp.eq.s32.totalorder %v284, %v358
    %vm432 = vcmp.eq.s32.totalorder %v285, %v358
    %vm433 = vcmp.eq.s32.totalorder %v286, %v358
    %vm434 = vcmp.eq.s32.totalorder %v287, %v358
    %vm435 = vcmp.eq.s32.totalorder %v284, %v359
    %vm436 = vcmp.eq.s32.totalorder %v285, %v359
    %vm437 = vcmp.eq.s32.totalorder %v286, %v359
    %vm438 = vcmp.eq.s32.totalorder %v287, %v359
    %vm439 = vcmp.eq.s32.totalorder %v284, %v360
    %vm440 = vcmp.eq.s32.totalorder %v285, %v360
    %vm441 = vcmp.eq.s32.totalorder %v286, %v360
    %vm442 = vcmp.eq.s32.totalorder %v287, %v360
    %vm443 = vcmp.eq.s32.totalorder %v284, %v361
    %vm444 = vcmp.eq.s32.totalorder %v285, %v361
    %vm445 = vcmp.eq.s32.totalorder %v286, %v361
    %vm446 = vcmp.eq.s32.totalorder %v287, %v361
    %vm447 = vcmp.eq.s32.totalorder %v284, %v362
    %vm448 = vcmp.eq.s32.totalorder %v285, %v362
    %vm449 = vcmp.eq.s32.totalorder %v286, %v362
    %vm450 = vcmp.eq.s32.totalorder %v287, %v362
    %vm451 = vcmp.eq.s32.totalorder %v284, %v363
    %vm452 = vcmp.eq.s32.totalorder %v285, %v363
    %vm453 = vcmp.eq.s32.totalorder %v286, %v363
    %vm454 = vcmp.eq.s32.totalorder %v287, %v363
    %vm455 = vcmp.eq.s32.totalorder %v284, %v364
    %vm456 = vcmp.eq.s32.totalorder %v285, %v364
    %vm457 = vcmp.eq.s32.totalorder %v286, %v364
    %vm458 = vcmp.eq.s32.totalorder %v287, %v364
    %vm459 = vcmp.eq.s32.totalorder %v284, %v365
    %vm460 = vcmp.eq.s32.totalorder %v285, %v365
    %vm461 = vcmp.eq.s32.totalorder %v286, %v365
    %vm462 = vcmp.eq.s32.totalorder %v287, %v365
    %vm463 = vcmp.eq.s32.totalorder %v284, %v366
    %vm464 = vcmp.eq.s32.totalorder %v285, %v366
    %vm465 = vcmp.eq.s32.totalorder %v286, %v366
    %vm466 = vcmp.eq.s32.totalorder %v287, %v366
    %vm467 = vcmp.eq.s32.totalorder %v284, %v367
    %vm468 = vcmp.eq.s32.totalorder %v285, %v367
    %vm469 = vcmp.eq.s32.totalorder %v286, %v367
    %vm470 = vcmp.eq.s32.totalorder %v287, %v367
    %vm471 = vcmp.eq.s32.totalorder %v284, %v368
    %vm472 = vcmp.eq.s32.totalorder %v285, %v368
    %vm473 = vcmp.eq.s32.totalorder %v286, %v368
    %vm474 = vcmp.eq.s32.totalorder %v287, %v368
    %vm475 = vcmp.eq.s32.totalorder %v284, %v369
    %vm476 = vcmp.eq.s32.totalorder %v285, %v369
    %vm477 = vcmp.eq.s32.totalorder %v286, %v369
    %vm478 = vcmp.eq.s32.totalorder %v287, %v369
    %vm479 = vcmp.eq.s32.totalorder %v284, %v370
    %vm480 = vcmp.eq.s32.totalorder %v285, %v370
    %vm481 = vcmp.eq.s32.totalorder %v286, %v370
    %vm482 = vcmp.eq.s32.totalorder %v287, %v370
    %vm483 = vcmp.eq.s32.totalorder %v284, %v371
    %vm484 = vcmp.eq.s32.totalorder %v285, %v371
    %vm485 = vcmp.eq.s32.totalorder %v286, %v371
    %vm486 = vcmp.eq.s32.totalorder %v287, %v371
    %vm487 = vcmp.eq.s32.totalorder %v284, %v372
    %vm488 = vcmp.eq.s32.totalorder %v285, %v372
    %vm489 = vcmp.eq.s32.totalorder %v286, %v372
    %vm490 = vcmp.eq.s32.totalorder %v287, %v372
    %vm491 = vcmp.eq.s32.totalorder %v284, %v373
    %vm492 = vcmp.eq.s32.totalorder %v285, %v373
    %vm493 = vcmp.eq.s32.totalorder %v286, %v373
    %vm494 = vcmp.eq.s32.totalorder %v287, %v373
    %vm495 = vcmp.eq.s32.totalorder %v284, %v374
    %vm496 = vcmp.eq.s32.totalorder %v285, %v374
    %vm497 = vcmp.eq.s32.totalorder %v286, %v374
    %vm498 = vcmp.eq.s32.totalorder %v287, %v374
    %vm499 = vcmp.eq.s32.totalorder %v284, %v375
    %vm500 = vcmp.eq.s32.totalorder %v285, %v375
    %vm501 = vcmp.eq.s32.totalorder %v286, %v375
    %vm502 = vcmp.eq.s32.totalorder %v287, %v375
    %vm503 = vcmp.eq.s32.totalorder %v284, %v376
    %vm504 = vcmp.eq.s32.totalorder %v285, %v376
    %vm505 = vcmp.eq.s32.totalorder %v286, %v376
    %vm506 = vcmp.eq.s32.totalorder %v287, %v376
    %vm507 = vcmp.eq.s32.totalorder %v284, %v377
    %vm508 = vcmp.eq.s32.totalorder %v285, %v377
    %vm509 = vcmp.eq.s32.totalorder %v286, %v377
    %vm510 = vcmp.eq.s32.totalorder %v287, %v377
    %vm511 = vcmp.eq.s32.totalorder %v284, %v378
    %vm512 = vcmp.eq.s32.totalorder %v285, %v378
    %vm513 = vcmp.eq.s32.totalorder %v286, %v378
    %vm514 = vcmp.eq.s32.totalorder %v287, %v378
    %vm515 = vcmp.eq.s32.totalorder %v284, %v379
    %vm516 = vcmp.eq.s32.totalorder %v285, %v379
    %vm517 = vcmp.eq.s32.totalorder %v286, %v379
    %vm518 = vcmp.eq.s32.totalorder %v287, %v379
    %vm519 = vcmp.eq.s32.totalorder %v284, %v380
    %vm520 = vcmp.eq.s32.totalorder %v285, %v380
    %vm521 = vcmp.eq.s32.totalorder %v286, %v380
    %vm522 = vcmp.eq.s32.totalorder %v287, %v380
    %vm523 = vcmp.eq.s32.totalorder %v284, %v381
    %vm524 = vcmp.eq.s32.totalorder %v285, %v381
    %vm525 = vcmp.eq.s32.totalorder %v286, %v381
    %vm526 = vcmp.eq.s32.totalorder %v287, %v381
    %vm527 = vcmp.eq.s32.totalorder %v284, %v382
    %vm528 = vcmp.eq.s32.totalorder %v285, %v382
    %vm529 = vcmp.eq.s32.totalorder %v286, %v382
    %vm530 = vcmp.eq.s32.totalorder %v287, %v382
    %vm531 = vcmp.eq.s32.totalorder %v284, %v383
    %vm532 = vcmp.eq.s32.totalorder %v285, %v383
    %vm533 = vcmp.eq.s32.totalorder %v286, %v383
    %vm534 = vcmp.eq.s32.totalorder %v287, %v383
    %vm535 = vcmp.eq.s32.totalorder %v284, %v384
    %vm536 = vcmp.eq.s32.totalorder %v285, %v384
    %vm537 = vcmp.eq.s32.totalorder %v286, %v384
    %vm538 = vcmp.eq.s32.totalorder %v287, %v384
    %vm539 = vcmp.eq.s32.totalorder %v284, %v385
    %vm540 = vcmp.eq.s32.totalorder %v285, %v385
    %vm541 = vcmp.eq.s32.totalorder %v286, %v385
    %vm542 = vcmp.eq.s32.totalorder %v287, %v385
    %vm543 = vcmp.eq.s32.totalorder %v284, %v386
    %vm544 = vcmp.eq.s32.totalorder %v285, %v386
    %vm545 = vcmp.eq.s32.totalorder %v286, %v386
    %vm546 = vcmp.eq.s32.totalorder %v287, %v386
    %vm547 = vcmp.eq.s32.totalorder %v284, %v387
    %vm548 = vcmp.eq.s32.totalorder %v285, %v387
    %vm549 = vcmp.eq.s32.totalorder %v286, %v387
    %vm550 = vcmp.eq.s32.totalorder %v287, %v387
    %vm551 = vcmp.eq.s32.totalorder %v284, %v388
    %vm552 = vcmp.eq.s32.totalorder %v285, %v388
    %vm553 = vcmp.eq.s32.totalorder %v286, %v388
    %vm554 = vcmp.eq.s32.totalorder %v287, %v388
    %vm555 = vcmp.eq.s32.totalorder %v284, %v389
    %vm556 = vcmp.eq.s32.totalorder %v285, %v389
    %vm557 = vcmp.eq.s32.totalorder %v286, %v389
    %vm558 = vcmp.eq.s32.totalorder %v287, %v389
    %vm559 = vcmp.eq.s32.totalorder %v284, %v390
    %vm560 = vcmp.eq.s32.totalorder %v285, %v390
    %vm561 = vcmp.eq.s32.totalorder %v286, %v390
    %vm562 = vcmp.eq.s32.totalorder %v287, %v390
    %vm563 = vcmp.eq.s32.totalorder %v284, %v391
    %vm564 = vcmp.eq.s32.totalorder %v285, %v391
    %vm565 = vcmp.eq.s32.totalorder %v286, %v391
    %vm566 = vcmp.eq.s32.totalorder %v287, %v391
    %vm567 = vcmp.eq.s32.totalorder %v284, %v392
    %vm568 = vcmp.eq.s32.totalorder %v285, %v392
    %vm569 = vcmp.eq.s32.totalorder %v286, %v392
    %vm570 = vcmp.eq.s32.totalorder %v287, %v392
    %vm571 = vcmp.eq.s32.totalorder %v284, %v393
    %vm572 = vcmp.eq.s32.totalorder %v285, %v393
    %vm573 = vcmp.eq.s32.totalorder %v286, %v393
    %vm574 = vcmp.eq.s32.totalorder %v287, %v393
    %vm575 = vcmp.eq.s32.totalorder %v284, %v394
    %vm576 = vcmp.eq.s32.totalorder %v285, %v394
    %vm577 = vcmp.eq.s32.totalorder %v286, %v394
    %vm578 = vcmp.eq.s32.totalorder %v287, %v394
    %vm579 = vcmp.eq.s32.totalorder %v284, %v395
    %vm580 = vcmp.eq.s32.totalorder %v285, %v395
    %vm581 = vcmp.eq.s32.totalorder %v286, %v395
    %vm582 = vcmp.eq.s32.totalorder %v287, %v395
    %vm583 = vcmp.eq.s32.totalorder %v284, %v396
    %vm584 = vcmp.eq.s32.totalorder %v285, %v396
    %vm585 = vcmp.eq.s32.totalorder %v286, %v396
    %vm586 = vcmp.eq.s32.totalorder %v287, %v396
    %vm587 = vcmp.eq.s32.totalorder %v284, %v397
    %vm588 = vcmp.eq.s32.totalorder %v285, %v397
    %vm589 = vcmp.eq.s32.totalorder %v286, %v397
    %vm590 = vcmp.eq.s32.totalorder %v287, %v397
    %vm591 = vcmp.eq.s32.totalorder %v284, %v398
    %vm592 = vcmp.eq.s32.totalorder %v285, %v398
    %vm593 = vcmp.eq.s32.totalorder %v286, %v398
    %vm594 = vcmp.eq.s32.totalorder %v287, %v398
    %vm595 = vcmp.eq.s32.totalorder %v284, %v399
    %vm596 = vcmp.eq.s32.totalorder %v285, %v399
    %vm597 = vcmp.eq.s32.totalorder %v286, %v399
    %vm598 = vcmp.eq.s32.totalorder %v287, %v399
    %vm599 = vcmp.eq.s32.totalorder %v284, %v400
    %vm600 = vcmp.eq.s32.totalorder %v285, %v400
    %vm601 = vcmp.eq.s32.totalorder %v286, %v400
    %vm602 = vcmp.eq.s32.totalorder %v287, %v400
    %vm603 = vcmp.eq.s32.totalorder %v284, %v401
    %vm604 = vcmp.eq.s32.totalorder %v285, %v401
    %vm605 = vcmp.eq.s32.totalorder %v286, %v401
    %vm606 = vcmp.eq.s32.totalorder %v287, %v401
    %vm607 = vcmp.eq.s32.totalorder %v284, %v402
    %vm608 = vcmp.eq.s32.totalorder %v285, %v402
    %vm609 = vcmp.eq.s32.totalorder %v286, %v402
    %vm610 = vcmp.eq.s32.totalorder %v287, %v402
    %vm611 = vcmp.eq.s32.totalorder %v284, %v403
    %vm612 = vcmp.eq.s32.totalorder %v285, %v403
    %vm613 = vcmp.eq.s32.totalorder %v286, %v403
    %vm614 = vcmp.eq.s32.totalorder %v287, %v403
    %vm615 = vcmp.eq.s32.totalorder %v284, %v404
    %vm616 = vcmp.eq.s32.totalorder %v285, %v404
    %vm617 = vcmp.eq.s32.totalorder %v286, %v404
    %vm618 = vcmp.eq.s32.totalorder %v287, %v404
    %vm619 = vcmp.eq.s32.totalorder %v284, %v405
    %vm620 = vcmp.eq.s32.totalorder %v285, %v405
    %vm621 = vcmp.eq.s32.totalorder %v286, %v405
    %vm622 = vcmp.eq.s32.totalorder %v287, %v405
    %vm623 = vcmp.eq.s32.totalorder %v284, %v406
    %vm624 = vcmp.eq.s32.totalorder %v285, %v406
    %vm625 = vcmp.eq.s32.totalorder %v286, %v406
    %vm626 = vcmp.eq.s32.totalorder %v287, %v406
    %vm627 = vcmp.eq.s32.totalorder %v284, %v407
    %vm628 = vcmp.eq.s32.totalorder %v285, %v407
    %vm629 = vcmp.eq.s32.totalorder %v286, %v407
    %vm630 = vcmp.eq.s32.totalorder %v287, %v407
    %vm631 = vcmp.eq.s32.totalorder %v284, %v408
    %vm632 = vcmp.eq.s32.totalorder %v285, %v408
    %vm633 = vcmp.eq.s32.totalorder %v286, %v408
    %vm634 = vcmp.eq.s32.totalorder %v287, %v408
    %vm635 = vcmp.eq.s32.totalorder %v284, %v409
    %vm636 = vcmp.eq.s32.totalorder %v285, %v409
    %vm637 = vcmp.eq.s32.totalorder %v286, %v409
    %vm638 = vcmp.eq.s32.totalorder %v287, %v409
    %vm639 = vcmp.eq.s32.totalorder %v284, %v410
    %vm640 = vcmp.eq.s32.totalorder %v285, %v410
    %vm641 = vcmp.eq.s32.totalorder %v286, %v410
    %vm642 = vcmp.eq.s32.totalorder %v287, %v410
    %vm643 = vcmp.eq.s32.totalorder %v284, %v411
    %vm644 = vcmp.eq.s32.totalorder %v285, %v411
    %vm645 = vcmp.eq.s32.totalorder %v286, %v411
    %vm646 = vcmp.eq.s32.totalorder %v287, %v411
    %vm647 = vcmp.eq.s32.totalorder %v284, %v412
    %vm648 = vcmp.eq.s32.totalorder %v285, %v412
    %vm649 = vcmp.eq.s32.totalorder %v286, %v412
    %vm650 = vcmp.eq.s32.totalorder %v287, %v412
    %vm651 = vcmp.eq.s32.totalorder %v284, %v413
    %vm652 = vcmp.eq.s32.totalorder %v285, %v413
    %vm653 = vcmp.eq.s32.totalorder %v286, %v413
    %vm654 = vcmp.eq.s32.totalorder %v287, %v413
    %vm655 = vcmp.eq.s32.totalorder %v284, %v414
    %vm656 = vcmp.eq.s32.totalorder %v285, %v414
    %vm657 = vcmp.eq.s32.totalorder %v286, %v414
    %vm658 = vcmp.eq.s32.totalorder %v287, %v414
    %vm659 = vcmp.eq.s32.totalorder %v284, %v415
    %vm660 = vcmp.eq.s32.totalorder %v285, %v415
    %vm661 = vcmp.eq.s32.totalorder %v286, %v415
    %vm662 = vcmp.eq.s32.totalorder %v287, %v415
    %vm663 = vcmp.eq.s32.totalorder %v284, %v416
    %vm664 = vcmp.eq.s32.totalorder %v285, %v416
    %vm665 = vcmp.eq.s32.totalorder %v286, %v416
    %vm666 = vcmp.eq.s32.totalorder %v287, %v416
    %vm667 = vcmp.eq.s32.totalorder %v284, %v417
    %vm668 = vcmp.eq.s32.totalorder %v285, %v417
    %vm669 = vcmp.eq.s32.totalorder %v286, %v417
    %vm670 = vcmp.eq.s32.totalorder %v287, %v417
    %vm671 = vcmp.eq.s32.totalorder %v284, %v418
    %vm672 = vcmp.eq.s32.totalorder %v285, %v418
    %vm673 = vcmp.eq.s32.totalorder %v286, %v418
    %vm674 = vcmp.eq.s32.totalorder %v287, %v418
    %v675 = vsel %vm419, 0.0, %v27
    %v676 = vsel %vm420, 0.0, %v28
    %v677 = vsel %vm421, 0.0, %v29
    %v678 = vsel %vm422, 0.0, %v30
    %v679 = vsel %vm423, 0.0, %v31
    %v680 = vsel %vm424, 0.0, %v32
    %v681 = vsel %vm425, 0.0, %v33
    %v682 = vsel %vm426, 0.0, %v34
    %v683 = vsel %vm427, 0.0, %v35
    %v684 = vsel %vm428, 0.0, %v36
    %v685 = vsel %vm429, 0.0, %v37
    %v686 = vsel %vm430, 0.0, %v38
    %v687 = vsel %vm431, 0.0, %v39
    %v688 = vsel %vm432, 0.0, %v40
    %v689 = vsel %vm433, 0.0, %v41
    %v690 = vsel %vm434, 0.0, %v42
    %v691 = vsel %vm435, 0.0, %v43
    %v692 = vsel %vm436, 0.0, %v44
    %v693 = vsel %vm437, 0.0, %v45
    %v694 = vsel %vm438, 0.0, %v46
    %v695 = vsel %vm439, 0.0, %v47
    %v696 = vsel %vm440, 0.0, %v48
    %v697 = vsel %vm441, 0.0, %v49
    %v698 = vsel %vm442, 0.0, %v50
    %v699 = vsel %vm443, 0.0, %v51
    %v700 = vsel %vm444, 0.0, %v52
    %v701 = vsel %vm445, 0.0, %v53
    %v702 = vsel %vm446, 0.0, %v54
    %v703 = vsel %vm447, 0.0, %v55
    %v704 = vsel %vm448, 0.0, %v56
    %v705 = vsel %vm449, 0.0, %v57
    %v706 = vsel %vm450, 0.0, %v58
    %v707 = vsel %vm451, 0.0, %v59
    %v708 = vsel %vm452, 0.0, %v60
    %v709 = vsel %vm453, 0.0, %v61
    %v710 = vsel %vm454, 0.0, %v62
    %v711 = vsel %vm455, 0.0, %v63
    %v712 = vsel %vm456, 0.0, %v64
    %v713 = vsel %vm457, 0.0, %v65
    %v714 = vsel %vm458, 0.0, %v66
    %v715 = vsel %vm459, 0.0, %v67
    %v716 = vsel %vm460, 0.0, %v68
    %v717 = vsel %vm461, 0.0, %v69
    %v718 = vsel %vm462, 0.0, %v70
    %v719 = vsel %vm463, 0.0, %v71
    %v720 = vsel %vm464, 0.0, %v72
    %v721 = vsel %vm465, 0.0, %v73
    %v722 = vsel %vm466, 0.0, %v74
    %v723 = vsel %vm467, 0.0, %v75
    %v724 = vsel %vm468, 0.0, %v76
    %v725 = vsel %vm469, 0.0, %v77
    %v726 = vsel %vm470, 0.0, %v78
    %v727 = vsel %vm471, 0.0, %v79
    %v728 = vsel %vm472, 0.0, %v80
    %v729 = vsel %vm473, 0.0, %v81
    %v730 = vsel %vm474, 0.0, %v82
    %v731 = vsel %vm475, 0.0, %v83
    %v732 = vsel %vm476, 0.0, %v84
    %v733 = vsel %vm477, 0.0, %v85
    %v734 = vsel %vm478, 0.0, %v86
    %v735 = vsel %vm479, 0.0, %v87
    %v736 = vsel %vm480, 0.0, %v88
    %v737 = vsel %vm481, 0.0, %v89
    %v738 = vsel %vm482, 0.0, %v90
    %v739 = vsel %vm483, 0.0, %v91
    %v740 = vsel %vm484, 0.0, %v92
    %v741 = vsel %vm485, 0.0, %v93
    %v742 = vsel %vm486, 0.0, %v94
    %v743 = vsel %vm487, 0.0, %v95
    %v744 = vsel %vm488, 0.0, %v96
    %v745 = vsel %vm489, 0.0, %v97
    %v746 = vsel %vm490, 0.0, %v98
    %v747 = vsel %vm491, 0.0, %v99
    %v748 = vsel %vm492, 0.0, %v100
    %v749 = vsel %vm493, 0.0, %v101
    %v750 = vsel %vm494, 0.0, %v102
    %v751 = vsel %vm495, 0.0, %v103
    %v752 = vsel %vm496, 0.0, %v104
    %v753 = vsel %vm497, 0.0, %v105
    %v754 = vsel %vm498, 0.0, %v106
    %v755 = vsel %vm499, 0.0, %v107
    %v756 = vsel %vm500, 0.0, %v108
    %v757 = vsel %vm501, 0.0, %v109
    %v758 = vsel %vm502, 0.0, %v110
    %v759 = vsel %vm503, 0.0, %v111
    %v760 = vsel %vm504, 0.0, %v112
    %v761 = vsel %vm505, 0.0, %v113
    %v762 = vsel %vm506, 0.0, %v114
    %v763 = vsel %vm507, 0.0, %v115
    %v764 = vsel %vm508, 0.0, %v116
    %v765 = vsel %vm509, 0.0, %v117
    %v766 = vsel %vm510, 0.0, %v118
    %v767 = vsel %vm511, 0.0, %v119
    %v768 = vsel %vm512, 0.0, %v120
    %v769 = vsel %vm513, 0.0, %v121
    %v770 = vsel %vm514, 0.0, %v122
    %v771 = vsel %vm515, 0.0, %v123
    %v772 = vsel %vm516, 0.0, %v124
    %v773 = vsel %vm517, 0.0, %v125
    %v774 = vsel %vm518, 0.0, %v126
    %v775 = vsel %vm519, 0.0, %v127
    %v776 = vsel %vm520, 0.0, %v128
    %v777 = vsel %vm521, 0.0, %v129
    %v778 = vsel %vm522, 0.0, %v130
    %v779 = vsel %vm523, 0.0, %v131
    %v780 = vsel %vm524, 0.0, %v132
    %v781 = vsel %vm525, 0.0, %v133
    %v782 = vsel %vm526, 0.0, %v134
    %v783 = vsel %vm527, 0.0, %v135
    %v784 = vsel %vm528, 0.0, %v136
    %v785 = vsel %vm529, 0.0, %v137
    %v786 = vsel %vm530, 0.0, %v138
    %v787 = vsel %vm531, 0.0, %v139
    %v788 = vsel %vm532, 0.0, %v140
    %v789 = vsel %vm533, 0.0, %v141
    %v790 = vsel %vm534, 0.0, %v142
    %v791 = vsel %vm535, 0.0, %v143
    %v792 = vsel %vm536, 0.0, %v144
    %v793 = vsel %vm537, 0.0, %v145
    %v794 = vsel %vm538, 0.0, %v146
    %v795 = vsel %vm539, 0.0, %v147
    %v796 = vsel %vm540, 0.0, %v148
    %v797 = vsel %vm541, 0.0, %v149
    %v798 = vsel %vm542, 0.0, %v150
    %v799 = vsel %vm543, 0.0, %v151
    %v800 = vsel %vm544, 0.0, %v152
    %v801 = vsel %vm545, 0.0, %v153
    %v802 = vsel %vm546, 0.0, %v154
    %v803 = vsel %vm547, 0.0, %v155
    %v804 = vsel %vm548, 0.0, %v156
    %v805 = vsel %vm549, 0.0, %v157
    %v806 = vsel %vm550, 0.0, %v158
    %v807 = vsel %vm551, 0.0, %v159
    %v808 = vsel %vm552, 0.0, %v160
    %v809 = vsel %vm553, 0.0, %v161
    %v810 = vsel %vm554, 0.0, %v162
    %v811 = vsel %vm555, 0.0, %v163
    %v812 = vsel %vm556, 0.0, %v164
    %v813 = vsel %vm557, 0.0, %v165
    %v814 = vsel %vm558, 0.0, %v166
    %v815 = vsel %vm559, 0.0, %v167
    %v816 = vsel %vm560, 0.0, %v168
    %v817 = vsel %vm561, 0.0, %v169
    %v818 = vsel %vm562, 0.0, %v170
    %v819 = vsel %vm563, 0.0, %v171
    %v820 = vsel %vm564, 0.0, %v172
    %v821 = vsel %vm565, 0.0, %v173
    %v822 = vsel %vm566, 0.0, %v174
    %v823 = vsel %vm567, 0.0, %v175
    %v824 = vsel %vm568, 0.0, %v176
    %v825 = vsel %vm569, 0.0, %v177
    %v826 = vsel %vm570, 0.0, %v178
    %v827 = vsel %vm571, 0.0, %v179
    %v828 = vsel %vm572, 0.0, %v180
    %v829 = vsel %vm573, 0.0, %v181
    %v830 = vsel %vm574, 0.0, %v182
    %v831 = vsel %vm575, 0.0, %v183
    %v832 = vsel %vm576, 0.0, %v184
    %v833 = vsel %vm577, 0.0, %v185
    %v834 = vsel %vm578, 0.0, %v186
    %v835 = vsel %vm579, 0.0, %v187
    %v836 = vsel %vm580, 0.0, %v188
    %v837 = vsel %vm581, 0.0, %v189
    %v838 = vsel %vm582, 0.0, %v190
    %v839 = vsel %vm583, 0.0, %v191
    %v840 = vsel %vm584, 0.0, %v192
    %v841 = vsel %vm585, 0.0, %v193
    %v842 = vsel %vm586, 0.0, %v194
    %v843 = vsel %vm587, 0.0, %v195
    %v844 = vsel %vm588, 0.0, %v196
    %v845 = vsel %vm589, 0.0, %v197
    %v846 = vsel %vm590, 0.0, %v198
    %v847 = vsel %vm591, 0.0, %v199
    %v848 = vsel %vm592, 0.0, %v200
    %v849 = vsel %vm593, 0.0, %v201
    %v850 = vsel %vm594, 0.0, %v202
    %v851 = vsel %vm595, 0.0, %v203
    %v852 = vsel %vm596, 0.0, %v204
    %v853 = vsel %vm597, 0.0, %v205
    %v854 = vsel %vm598, 0.0, %v206
    %v855 = vsel %vm599, 0.0, %v207
    %v856 = vsel %vm600, 0.0, %v208
    %v857 = vsel %vm601, 0.0, %v209
    %v858 = vsel %vm602, 0.0, %v210
    %v859 = vsel %vm603, 0.0, %v211
    %v860 = vsel %vm604, 0.0, %v212
    %v861 = vsel %vm605, 0.0, %v213
    %v862 = vsel %vm606, 0.0, %v214
    %v863 = vsel %vm607, 0.0, %v215
    %v864 = vsel %vm608, 0.0, %v216
    %v865 = vsel %vm609, 0.0, %v217
    %v866 = vsel %vm610, 0.0, %v218
    %v867 = vsel %vm611, 0.0, %v219
    %v868 = vsel %vm612, 0.0, %v220
    %v869 = vsel %vm613, 0.0, %v221
    %v870 = vsel %vm614, 0.0, %v222
    %v871 = vsel %vm615, 0.0, %v223
    %v872 = vsel %vm616, 0.0, %v224
    %v873 = vsel %vm617, 0.0, %v225
    %v874 = vsel %vm618, 0.0, %v226
    %v875 = vsel %vm619, 0.0, %v227
    %v876 = vsel %vm620, 0.0, %v228
    %v877 = vsel %vm621, 0.0, %v229
    %v878 = vsel %vm622, 0.0, %v230
    %v879 = vsel %vm623, 0.0, %v231
    %v880 = vsel %vm624, 0.0, %v232
    %v881 = vsel %vm625, 0.0, %v233
    %v882 = vsel %vm626, 0.0, %v234
    %v883 = vsel %vm627, 0.0, %v235
    %v884 = vsel %vm628, 0.0, %v236
    %v885 = vsel %vm629, 0.0, %v237
    %v886 = vsel %vm630, 0.0, %v238
    %v887 = vsel %vm631, 0.0, %v239
    %v888 = vsel %vm632, 0.0, %v240
    %v889 = vsel %vm633, 0.0, %v241
    %v890 = vsel %vm634, 0.0, %v242
    %v891 = vsel %vm635, 0.0, %v243
    %v892 = vsel %vm636, 0.0, %v244
    %v893 = vsel %vm637, 0.0, %v245
    %v894 = vsel %vm638, 0.0, %v246
    %v895 = vsel %vm639, 0.0, %v247
    %v896 = vsel %vm640, 0.0, %v248
    %v897 = vsel %vm641, 0.0, %v249
    %v898 = vsel %vm642, 0.0, %v250
    %v899 = vsel %vm643, 0.0, %v251
    %v900 = vsel %vm644, 0.0, %v252
    %v901 = vsel %vm645, 0.0, %v253
    %v902 = vsel %vm646, 0.0, %v254
    %v903 = vsel %vm647, 0.0, %v255
    %v904 = vsel %vm648, 0.0, %v256
    %v905 = vsel %vm649, 0.0, %v257
    %v906 = vsel %vm650, 0.0, %v258
    %v907 = vsel %vm651, 0.0, %v259
    %v908 = vsel %vm652, 0.0, %v260
    %v909 = vsel %vm653, 0.0, %v261
    %v910 = vsel %vm654, 0.0, %v262
    %v911 = vsel %vm655, 0.0, %v263
    %v912 = vsel %vm656, 0.0, %v264
    %v913 = vsel %vm657, 0.0, %v265
    %v914 = vsel %vm658, 0.0, %v266
    %v915 = vsel %vm659, 0.0, %v267
    %v916 = vsel %vm660, 0.0, %v268
    %v917 = vsel %vm661, 0.0, %v269
    %v918 = vsel %vm662, 0.0, %v270
    %v919 = vsel %vm663, 0.0, %v271
    %v920 = vsel %vm664, 0.0, %v272
    %v921 = vsel %vm665, 0.0, %v273
    %v922 = vsel %vm666, 0.0, %v274
    %v923 = vsel %vm667, 0.0, %v275
    %v924 = vsel %vm668, 0.0, %v276
    %v925 = vsel %vm669, 0.0, %v277
    %v926 = vsel %vm670, 0.0, %v278
    %v927 = vsel %vm671, 0.0, %v279
    %v928 = vsel %vm672, 0.0, %v280
    %v929 = vsel %vm673, 0.0, %v281
    %v930 = vsel %vm674, 0.0, %v282
    %v931 = vpack.c.bf16 %v679, %v675
    %v932 = vpack.c.bf16 %v680, %v676
    %v933 = vpack.c.bf16 %v681, %v677
    %v934 = vpack.c.bf16 %v682, %v678
    %v935 = vpack.c.bf16 %v687, %v683
    %v936 = vpack.c.bf16 %v688, %v684
    %v937 = vpack.c.bf16 %v689, %v685
    %v938 = vpack.c.bf16 %v690, %v686
    %v939 = vpack.c.bf16 %v695, %v691
    %v940 = vpack.c.bf16 %v696, %v692
    %v941 = vpack.c.bf16 %v697, %v693
    %v942 = vpack.c.bf16 %v698, %v694
    %v943 = vpack.c.bf16 %v703, %v699
    %v944 = vpack.c.bf16 %v704, %v700
    %v945 = vpack.c.bf16 %v705, %v701
    %v946 = vpack.c.bf16 %v706, %v702
    %v947 = vpack.c.bf16 %v711, %v707
    %v948 = vpack.c.bf16 %v712, %v708
    %v949 = vpack.c.bf16 %v713, %v709
    %v950 = vpack.c.bf16 %v714, %v710
    %v951 = vpack.c.bf16 %v719, %v715
    %v952 = vpack.c.bf16 %v720, %v716
    %v953 = vpack.c.bf16 %v721, %v717
    %v954 = vpack.c.bf16 %v722, %v718
    %v955 = vpack.c.bf16 %v727, %v723
    %v956 = vpack.c.bf16 %v728, %v724
    %v957 = vpack.c.bf16 %v729, %v725
    %v958 = vpack.c.bf16 %v730, %v726
    %v959 = vpack.c.bf16 %v735, %v731
    %v960 = vpack.c.bf16 %v736, %v732
    %v961 = vpack.c.bf16 %v737, %v733
    %v962 = vpack.c.bf16 %v738, %v734
    %v963 = vpack.c.bf16 %v743, %v739
    %v964 = vpack.c.bf16 %v744, %v740
    %v965 = vpack.c.bf16 %v745, %v741
    %v966 = vpack.c.bf16 %v746, %v742
    %v967 = vpack.c.bf16 %v751, %v747
    %v968 = vpack.c.bf16 %v752, %v748
    %v969 = vpack.c.bf16 %v753, %v749
    %v970 = vpack.c.bf16 %v754, %v750
    %v971 = vpack.c.bf16 %v759, %v755
    %v972 = vpack.c.bf16 %v760, %v756
    %v973 = vpack.c.bf16 %v761, %v757
    %v974 = vpack.c.bf16 %v762, %v758
    %v975 = vpack.c.bf16 %v767, %v763
    %v976 = vpack.c.bf16 %v768, %v764
    %v977 = vpack.c.bf16 %v769, %v765
    %v978 = vpack.c.bf16 %v770, %v766
    %v979 = vpack.c.bf16 %v775, %v771
    %v980 = vpack.c.bf16 %v776, %v772
    %v981 = vpack.c.bf16 %v777, %v773
    %v982 = vpack.c.bf16 %v778, %v774
    %v983 = vpack.c.bf16 %v783, %v779
    %v984 = vpack.c.bf16 %v784, %v780
    %v985 = vpack.c.bf16 %v785, %v781
    %v986 = vpack.c.bf16 %v786, %v782
    %v987 = vpack.c.bf16 %v791, %v787
    %v988 = vpack.c.bf16 %v792, %v788
    %v989 = vpack.c.bf16 %v793, %v789
    %v990 = vpack.c.bf16 %v794, %v790
    %v991 = vpack.c.bf16 %v799, %v795
    %v992 = vpack.c.bf16 %v800, %v796
    %v993 = vpack.c.bf16 %v801, %v797
    %v994 = vpack.c.bf16 %v802, %v798
    %v995 = vpack.c.bf16 %v807, %v803
    %v996 = vpack.c.bf16 %v808, %v804
    %v997 = vpack.c.bf16 %v809, %v805
    %v998 = vpack.c.bf16 %v810, %v806
    %v999 = vpack.c.bf16 %v815, %v811
    %v1000 = vpack.c.bf16 %v816, %v812
    %v1001 = vpack.c.bf16 %v817, %v813
    %v1002 = vpack.c.bf16 %v818, %v814
    %v1003 = vpack.c.bf16 %v823, %v819
    %v1004 = vpack.c.bf16 %v824, %v820
    %v1005 = vpack.c.bf16 %v825, %v821
    %v1006 = vpack.c.bf16 %v826, %v822
    %v1007 = vpack.c.bf16 %v831, %v827
    %v1008 = vpack.c.bf16 %v832, %v828
    %v1009 = vpack.c.bf16 %v833, %v829
    %v1010 = vpack.c.bf16 %v834, %v830
    %v1011 = vpack.c.bf16 %v839, %v835
    %v1012 = vpack.c.bf16 %v840, %v836
    %v1013 = vpack.c.bf16 %v841, %v837
    %v1014 = vpack.c.bf16 %v842, %v838
    %v1015 = vpack.c.bf16 %v847, %v843
    %v1016 = vpack.c.bf16 %v848, %v844
    %v1017 = vpack.c.bf16 %v849, %v845
    %v1018 = vpack.c.bf16 %v850, %v846
    %v1019 = vpack.c.bf16 %v855, %v851
    %v1020 = vpack.c.bf16 %v856, %v852
    %v1021 = vpack.c.bf16 %v857, %v853
    %v1022 = vpack.c.bf16 %v858, %v854
    %v1023 = vpack.c.bf16 %v863, %v859
    %v1024 = vpack.c.bf16 %v864, %v860
    %v1025 = vpack.c.bf16 %v865, %v861
    %v1026 = vpack.c.bf16 %v866, %v862
    %v1027 = vpack.c.bf16 %v871, %v867
    %v1028 = vpack.c.bf16 %v872, %v868
    %v1029 = vpack.c.bf16 %v873, %v869
    %v1030 = vpack.c.bf16 %v874, %v870
    %v1031 = vpack.c.bf16 %v879, %v875
    %v1032 = vpack.c.bf16 %v880, %v876
    %v1033 = vpack.c.bf16 %v881, %v877
    %v1034 = vpack.c.bf16 %v882, %v878
    %v1035 = vpack.c.bf16 %v887, %v883
    %v1036 = vpack.c.bf16 %v888, %v884
    %v1037 = vpack.c.bf16 %v889, %v885
    %v1038 = vpack.c.bf16 %v890, %v886
    %v1039 = vpack.c.bf16 %v895, %v891
    %v1040 = vpack.c.bf16 %v896, %v892
    %v1041 = vpack.c.bf16 %v897, %v893
    %v1042 = vpack.c.bf16 %v898, %v894
    %v1043 = vpack.c.bf16 %v903, %v899
    %v1044 = vpack.c.bf16 %v904, %v900
    %v1045 = vpack.c.bf16 %v905, %v901
    %v1046 = vpack.c.bf16 %v906, %v902
    %v1047 = vpack.c.bf16 %v911, %v907
    %v1048 = vpack.c.bf16 %v912, %v908
    %v1049 = vpack.c.bf16 %v913, %v909
    %v1050 = vpack.c.bf16 %v914, %v910
    %v1051 = vpack.c.bf16 %v919, %v915
    %v1052 = vpack.c.bf16 %v920, %v916
    %v1053 = vpack.c.bf16 %v921, %v917
    %v1054 = vpack.c.bf16 %v922, %v918
    %v1055 = vpack.c.bf16 %v927, %v923
    %v1056 = vpack.c.bf16 %v928, %v924
    %v1057 = vpack.c.bf16 %v929, %v925
    %v1058 = vpack.c.bf16 %v930, %v926
    %v1187 = vunpack.c.l.b16 %v931
    %v1188 = vunpack.c.l.b16 %v932
    %v1189 = vunpack.c.l.b16 %v933
    %v1190 = vunpack.c.l.b16 %v934
    %v1191 = vunpack.c.h.b16 %v931
    %v1192 = vunpack.c.h.b16 %v932
    %v1193 = vunpack.c.h.b16 %v933
    %v1194 = vunpack.c.h.b16 %v934
    %v1195 = vunpack.c.l.b16 %v935
    %v1196 = vunpack.c.l.b16 %v936
    %v1197 = vunpack.c.l.b16 %v937
    %v1198 = vunpack.c.l.b16 %v938
    %v1199 = vunpack.c.h.b16 %v935
    %v1200 = vunpack.c.h.b16 %v936
    %v1201 = vunpack.c.h.b16 %v937
    %v1202 = vunpack.c.h.b16 %v938
    %v1203 = vunpack.c.l.b16 %v939
    %v1204 = vunpack.c.l.b16 %v940
    %v1205 = vunpack.c.l.b16 %v941
    %v1206 = vunpack.c.l.b16 %v942
    %v1207 = vunpack.c.h.b16 %v939
    %v1208 = vunpack.c.h.b16 %v940
    %v1209 = vunpack.c.h.b16 %v941
    %v1210 = vunpack.c.h.b16 %v942
    %v1211 = vunpack.c.l.b16 %v943
    %v1212 = vunpack.c.l.b16 %v944
    %v1213 = vunpack.c.l.b16 %v945
    %v1214 = vunpack.c.l.b16 %v946
    %v1215 = vunpack.c.h.b16 %v943
    %v1216 = vunpack.c.h.b16 %v944
    %v1217 = vunpack.c.h.b16 %v945
    %v1218 = vunpack.c.h.b16 %v946
    %v1219 = vunpack.c.l.b16 %v947
    %v1220 = vunpack.c.l.b16 %v948
    %v1221 = vunpack.c.l.b16 %v949
    %v1222 = vunpack.c.l.b16 %v950
    %v1223 = vunpack.c.h.b16 %v947
    %v1224 = vunpack.c.h.b16 %v948
    %v1225 = vunpack.c.h.b16 %v949
    %v1226 = vunpack.c.h.b16 %v950
    %v1227 = vunpack.c.l.b16 %v951
    %v1228 = vunpack.c.l.b16 %v952
    %v1229 = vunpack.c.l.b16 %v953
    %v1230 = vunpack.c.l.b16 %v954
    %v1231 = vunpack.c.h.b16 %v951
    %v1232 = vunpack.c.h.b16 %v952
    %v1233 = vunpack.c.h.b16 %v953
    %v1234 = vunpack.c.h.b16 %v954
    %v1235 = vunpack.c.l.b16 %v955
    %v1236 = vunpack.c.l.b16 %v956
    %v1237 = vunpack.c.l.b16 %v957
    %v1238 = vunpack.c.l.b16 %v958
    %v1239 = vunpack.c.h.b16 %v955
    %v1240 = vunpack.c.h.b16 %v956
    %v1241 = vunpack.c.h.b16 %v957
    %v1242 = vunpack.c.h.b16 %v958
    %v1243 = vunpack.c.l.b16 %v959
    %v1244 = vunpack.c.l.b16 %v960
    %v1245 = vunpack.c.l.b16 %v961
    %v1246 = vunpack.c.l.b16 %v962
    %v1247 = vunpack.c.h.b16 %v959
    %v1248 = vunpack.c.h.b16 %v960
    %v1249 = vunpack.c.h.b16 %v961
    %v1250 = vunpack.c.h.b16 %v962
    %v1251 = vunpack.c.l.b16 %v963
    %v1252 = vunpack.c.l.b16 %v964
    %v1253 = vunpack.c.l.b16 %v965
    %v1254 = vunpack.c.l.b16 %v966
    %v1255 = vunpack.c.h.b16 %v963
    %v1256 = vunpack.c.h.b16 %v964
    %v1257 = vunpack.c.h.b16 %v965
    %v1258 = vunpack.c.h.b16 %v966
    %v1259 = vunpack.c.l.b16 %v967
    %v1260 = vunpack.c.l.b16 %v968
    %v1261 = vunpack.c.l.b16 %v969
    %v1262 = vunpack.c.l.b16 %v970
    %v1263 = vunpack.c.h.b16 %v967
    %v1264 = vunpack.c.h.b16 %v968
    %v1265 = vunpack.c.h.b16 %v969
    %v1266 = vunpack.c.h.b16 %v970
    %v1267 = vunpack.c.l.b16 %v971
    %v1268 = vunpack.c.l.b16 %v972
    %v1269 = vunpack.c.l.b16 %v973
    %v1270 = vunpack.c.l.b16 %v974
    %v1271 = vunpack.c.h.b16 %v971
    %v1272 = vunpack.c.h.b16 %v972
    %v1273 = vunpack.c.h.b16 %v973
    %v1274 = vunpack.c.h.b16 %v974
    %v1275 = vunpack.c.l.b16 %v975
    %v1276 = vunpack.c.l.b16 %v976
    %v1277 = vunpack.c.l.b16 %v977
    %v1278 = vunpack.c.l.b16 %v978
    %v1279 = vunpack.c.h.b16 %v975
    %v1280 = vunpack.c.h.b16 %v976
    %v1281 = vunpack.c.h.b16 %v977
    %v1282 = vunpack.c.h.b16 %v978
    %v1283 = vunpack.c.l.b16 %v979
    %v1284 = vunpack.c.l.b16 %v980
    %v1285 = vunpack.c.l.b16 %v981
    %v1286 = vunpack.c.l.b16 %v982
    %v1287 = vunpack.c.h.b16 %v979
    %v1288 = vunpack.c.h.b16 %v980
    %v1289 = vunpack.c.h.b16 %v981
    %v1290 = vunpack.c.h.b16 %v982
    %v1291 = vunpack.c.l.b16 %v983
    %v1292 = vunpack.c.l.b16 %v984
    %v1293 = vunpack.c.l.b16 %v985
    %v1294 = vunpack.c.l.b16 %v986
    %v1295 = vunpack.c.h.b16 %v983
    %v1296 = vunpack.c.h.b16 %v984
    %v1297 = vunpack.c.h.b16 %v985
    %v1298 = vunpack.c.h.b16 %v986
    %v1299 = vunpack.c.l.b16 %v987
    %v1300 = vunpack.c.l.b16 %v988
    %v1301 = vunpack.c.l.b16 %v989
    %v1302 = vunpack.c.l.b16 %v990
    %v1303 = vunpack.c.h.b16 %v987
    %v1304 = vunpack.c.h.b16 %v988
    %v1305 = vunpack.c.h.b16 %v989
    %v1306 = vunpack.c.h.b16 %v990
    %v1307 = vunpack.c.l.b16 %v991
    %v1308 = vunpack.c.l.b16 %v992
    %v1309 = vunpack.c.l.b16 %v993
    %v1310 = vunpack.c.l.b16 %v994
    %v1311 = vunpack.c.h.b16 %v991
    %v1312 = vunpack.c.h.b16 %v992
    %v1313 = vunpack.c.h.b16 %v993
    %v1314 = vunpack.c.h.b16 %v994
    %v1315 = vunpack.c.l.b16 %v995
    %v1316 = vunpack.c.l.b16 %v996
    %v1317 = vunpack.c.l.b16 %v997
    %v1318 = vunpack.c.l.b16 %v998
    %v1319 = vunpack.c.h.b16 %v995
    %v1320 = vunpack.c.h.b16 %v996
    %v1321 = vunpack.c.h.b16 %v997
    %v1322 = vunpack.c.h.b16 %v998
    %v1323 = vunpack.c.l.b16 %v999
    %v1324 = vunpack.c.l.b16 %v1000
    %v1325 = vunpack.c.l.b16 %v1001
    %v1326 = vunpack.c.l.b16 %v1002
    %v1327 = vunpack.c.h.b16 %v999
    %v1328 = vunpack.c.h.b16 %v1000
    %v1329 = vunpack.c.h.b16 %v1001
    %v1330 = vunpack.c.h.b16 %v1002
    %v1331 = vunpack.c.l.b16 %v1003
    %v1332 = vunpack.c.l.b16 %v1004
    %v1333 = vunpack.c.l.b16 %v1005
    %v1334 = vunpack.c.l.b16 %v1006
    %v1335 = vunpack.c.h.b16 %v1003
    %v1336 = vunpack.c.h.b16 %v1004
    %v1337 = vunpack.c.h.b16 %v1005
    %v1338 = vunpack.c.h.b16 %v1006
    %v1339 = vunpack.c.l.b16 %v1007
    %v1340 = vunpack.c.l.b16 %v1008
    %v1341 = vunpack.c.l.b16 %v1009
    %v1342 = vunpack.c.l.b16 %v1010
    %v1343 = vunpack.c.h.b16 %v1007
    %v1344 = vunpack.c.h.b16 %v1008
    %v1345 = vunpack.c.h.b16 %v1009
    %v1346 = vunpack.c.h.b16 %v1010
    %v1347 = vunpack.c.l.b16 %v1011
    %v1348 = vunpack.c.l.b16 %v1012
    %v1349 = vunpack.c.l.b16 %v1013
    %v1350 = vunpack.c.l.b16 %v1014
    %v1351 = vunpack.c.h.b16 %v1011
    %v1352 = vunpack.c.h.b16 %v1012
    %v1353 = vunpack.c.h.b16 %v1013
    %v1354 = vunpack.c.h.b16 %v1014
    %v1355 = vunpack.c.l.b16 %v1015
    %v1356 = vunpack.c.l.b16 %v1016
    %v1357 = vunpack.c.l.b16 %v1017
    %v1358 = vunpack.c.l.b16 %v1018
    %v1359 = vunpack.c.h.b16 %v1015
    %v1360 = vunpack.c.h.b16 %v1016
    %v1361 = vunpack.c.h.b16 %v1017
    %v1362 = vunpack.c.h.b16 %v1018
    %v1363 = vunpack.c.l.b16 %v1019
    %v1364 = vunpack.c.l.b16 %v1020
    %v1365 = vunpack.c.l.b16 %v1021
    %v1366 = vunpack.c.l.b16 %v1022
    %v1367 = vunpack.c.h.b16 %v1019
    %v1368 = vunpack.c.h.b16 %v1020
    %v1369 = vunpack.c.h.b16 %v1021
    %v1370 = vunpack.c.h.b16 %v1022
    %v1371 = vunpack.c.l.b16 %v1023
    %v1372 = vunpack.c.l.b16 %v1024
    %v1373 = vunpack.c.l.b16 %v1025
    %v1374 = vunpack.c.l.b16 %v1026
    %v1375 = vunpack.c.h.b16 %v1023
    %v1376 = vunpack.c.h.b16 %v1024
    %v1377 = vunpack.c.h.b16 %v1025
    %v1378 = vunpack.c.h.b16 %v1026
    %v1379 = vunpack.c.l.b16 %v1027
    %v1380 = vunpack.c.l.b16 %v1028
    %v1381 = vunpack.c.l.b16 %v1029
    %v1382 = vunpack.c.l.b16 %v1030
    %v1383 = vunpack.c.h.b16 %v1027
    %v1384 = vunpack.c.h.b16 %v1028
    %v1385 = vunpack.c.h.b16 %v1029
    %v1386 = vunpack.c.h.b16 %v1030
    %v1387 = vunpack.c.l.b16 %v1031
    %v1388 = vunpack.c.l.b16 %v1032
    %v1389 = vunpack.c.l.b16 %v1033
    %v1390 = vunpack.c.l.b16 %v1034
    %v1391 = vunpack.c.h.b16 %v1031
    %v1392 = vunpack.c.h.b16 %v1032
    %v1393 = vunpack.c.h.b16 %v1033
    %v1394 = vunpack.c.h.b16 %v1034
    %v1395 = vunpack.c.l.b16 %v1035
    %v1396 = vunpack.c.l.b16 %v1036
    %v1397 = vunpack.c.l.b16 %v1037
    %v1398 = vunpack.c.l.b16 %v1038
    %v1399 = vunpack.c.h.b16 %v1035
    %v1400 = vunpack.c.h.b16 %v1036
    %v1401 = vunpack.c.h.b16 %v1037
    %v1402 = vunpack.c.h.b16 %v1038
    %v1403 = vunpack.c.l.b16 %v1039
    %v1404 = vunpack.c.l.b16 %v1040
    %v1405 = vunpack.c.l.b16 %v1041
    %v1406 = vunpack.c.l.b16 %v1042
    %v1407 = vunpack.c.h.b16 %v1039
    %v1408 = vunpack.c.h.b16 %v1040
    %v1409 = vunpack.c.h.b16 %v1041
    %v1410 = vunpack.c.h.b16 %v1042
    %v1411 = vunpack.c.l.b16 %v1043
    %v1412 = vunpack.c.l.b16 %v1044
    %v1413 = vunpack.c.l.b16 %v1045
    %v1414 = vunpack.c.l.b16 %v1046
    %v1415 = vunpack.c.h.b16 %v1043
    %v1416 = vunpack.c.h.b16 %v1044
    %v1417 = vunpack.c.h.b16 %v1045
    %v1418 = vunpack.c.h.b16 %v1046
    %v1419 = vunpack.c.l.b16 %v1047
    %v1420 = vunpack.c.l.b16 %v1048
    %v1421 = vunpack.c.l.b16 %v1049
    %v1422 = vunpack.c.l.b16 %v1050
    %v1423 = vunpack.c.h.b16 %v1047
    %v1424 = vunpack.c.h.b16 %v1048
    %v1425 = vunpack.c.h.b16 %v1049
    %v1426 = vunpack.c.h.b16 %v1050
    %v1427 = vunpack.c.l.b16 %v1051
    %v1428 = vunpack.c.l.b16 %v1052
    %v1429 = vunpack.c.l.b16 %v1053
    %v1430 = vunpack.c.l.b16 %v1054
    %v1431 = vunpack.c.h.b16 %v1051
    %v1432 = vunpack.c.h.b16 %v1052
    %v1433 = vunpack.c.h.b16 %v1053
    %v1434 = vunpack.c.h.b16 %v1054
    %v1435 = vunpack.c.l.b16 %v1055
    %v1436 = vunpack.c.l.b16 %v1056
    %v1437 = vunpack.c.l.b16 %v1057
    %v1438 = vunpack.c.l.b16 %v1058
    %v1439 = vunpack.c.h.b16 %v1055
    %v1440 = vunpack.c.h.b16 %v1056
    %v1441 = vunpack.c.h.b16 %v1057
    %v1442 = vunpack.c.h.b16 %v1058
    %v1443 = vpack.c.b16 %v1188, %v1187
    %v1444 = vpack.c.b16 %v1190, %v1189
    %v1445 = vpack.c.b16 %v1192, %v1191
    %v1446 = vpack.c.b16 %v1194, %v1193
    %v1447 = vpack.c.b16 %v1196, %v1195
    %v1448 = vpack.c.b16 %v1198, %v1197
    %v1449 = vpack.c.b16 %v1200, %v1199
    %v1450 = vpack.c.b16 %v1202, %v1201
    %v1451 = vpack.c.b16 %v1204, %v1203
    %v1452 = vpack.c.b16 %v1206, %v1205
    %v1453 = vpack.c.b16 %v1208, %v1207
    %v1454 = vpack.c.b16 %v1210, %v1209
    %v1455 = vpack.c.b16 %v1212, %v1211
    %v1456 = vpack.c.b16 %v1214, %v1213
    %v1457 = vpack.c.b16 %v1216, %v1215
    %v1458 = vpack.c.b16 %v1218, %v1217
    %v1459 = vpack.c.b16 %v1220, %v1219
    %v1460 = vpack.c.b16 %v1222, %v1221
    %v1461 = vpack.c.b16 %v1224, %v1223
    %v1462 = vpack.c.b16 %v1226, %v1225
    %v1463 = vpack.c.b16 %v1228, %v1227
    %v1464 = vpack.c.b16 %v1230, %v1229
    %v1465 = vpack.c.b16 %v1232, %v1231
    %v1466 = vpack.c.b16 %v1234, %v1233
    %v1467 = vpack.c.b16 %v1236, %v1235
    %v1468 = vpack.c.b16 %v1238, %v1237
    %v1469 = vpack.c.b16 %v1240, %v1239
    %v1470 = vpack.c.b16 %v1242, %v1241
    %v1471 = vpack.c.b16 %v1244, %v1243
    %v1472 = vpack.c.b16 %v1246, %v1245
    %v1473 = vpack.c.b16 %v1248, %v1247
    %v1474 = vpack.c.b16 %v1250, %v1249
    %v1475 = vpack.c.b16 %v1252, %v1251
    %v1476 = vpack.c.b16 %v1254, %v1253
    %v1477 = vpack.c.b16 %v1256, %v1255
    %v1478 = vpack.c.b16 %v1258, %v1257
    %v1479 = vpack.c.b16 %v1260, %v1259
    %v1480 = vpack.c.b16 %v1262, %v1261
    %v1481 = vpack.c.b16 %v1264, %v1263
    %v1482 = vpack.c.b16 %v1266, %v1265
    %v1483 = vpack.c.b16 %v1268, %v1267
    %v1484 = vpack.c.b16 %v1270, %v1269
    %v1485 = vpack.c.b16 %v1272, %v1271
    %v1486 = vpack.c.b16 %v1274, %v1273
    %v1487 = vpack.c.b16 %v1276, %v1275
    %v1488 = vpack.c.b16 %v1278, %v1277
    %v1489 = vpack.c.b16 %v1280, %v1279
    %v1490 = vpack.c.b16 %v1282, %v1281
    %v1491 = vpack.c.b16 %v1284, %v1283
    %v1492 = vpack.c.b16 %v1286, %v1285
    %v1493 = vpack.c.b16 %v1288, %v1287
    %v1494 = vpack.c.b16 %v1290, %v1289
    %v1495 = vpack.c.b16 %v1292, %v1291
    %v1496 = vpack.c.b16 %v1294, %v1293
    %v1497 = vpack.c.b16 %v1296, %v1295
    %v1498 = vpack.c.b16 %v1298, %v1297
    %v1499 = vpack.c.b16 %v1300, %v1299
    %v1500 = vpack.c.b16 %v1302, %v1301
    %v1501 = vpack.c.b16 %v1304, %v1303
    %v1502 = vpack.c.b16 %v1306, %v1305
    %v1503 = vpack.c.b16 %v1308, %v1307
    %v1504 = vpack.c.b16 %v1310, %v1309
    %v1505 = vpack.c.b16 %v1312, %v1311
    %v1506 = vpack.c.b16 %v1314, %v1313
    %v1507 = vpack.c.b16 %v1316, %v1315
    %v1508 = vpack.c.b16 %v1318, %v1317
    %v1509 = vpack.c.b16 %v1320, %v1319
    %v1510 = vpack.c.b16 %v1322, %v1321
    %v1511 = vpack.c.b16 %v1324, %v1323
    %v1512 = vpack.c.b16 %v1326, %v1325
    %v1513 = vpack.c.b16 %v1328, %v1327
    %v1514 = vpack.c.b16 %v1330, %v1329
    %v1515 = vpack.c.b16 %v1332, %v1331
    %v1516 = vpack.c.b16 %v1334, %v1333
    %v1517 = vpack.c.b16 %v1336, %v1335
    %v1518 = vpack.c.b16 %v1338, %v1337
    %v1519 = vpack.c.b16 %v1340, %v1339
    %v1520 = vpack.c.b16 %v1342, %v1341
    %v1521 = vpack.c.b16 %v1344, %v1343
    %v1522 = vpack.c.b16 %v1346, %v1345
    %v1523 = vpack.c.b16 %v1348, %v1347
    %v1524 = vpack.c.b16 %v1350, %v1349
    %v1525 = vpack.c.b16 %v1352, %v1351
    %v1526 = vpack.c.b16 %v1354, %v1353
    %v1527 = vpack.c.b16 %v1356, %v1355
    %v1528 = vpack.c.b16 %v1358, %v1357
    %v1529 = vpack.c.b16 %v1360, %v1359
    %v1530 = vpack.c.b16 %v1362, %v1361
    %v1531 = vpack.c.b16 %v1364, %v1363
    %v1532 = vpack.c.b16 %v1366, %v1365
    %v1533 = vpack.c.b16 %v1368, %v1367
    %v1534 = vpack.c.b16 %v1370, %v1369
    %v1535 = vpack.c.b16 %v1372, %v1371
    %v1536 = vpack.c.b16 %v1374, %v1373
    %v1537 = vpack.c.b16 %v1376, %v1375
    %v1538 = vpack.c.b16 %v1378, %v1377
    %v1539 = vpack.c.b16 %v1380, %v1379
    %v1540 = vpack.c.b16 %v1382, %v1381
    %v1541 = vpack.c.b16 %v1384, %v1383
    %v1542 = vpack.c.b16 %v1386, %v1385
    %v1543 = vpack.c.b16 %v1388, %v1387
    %v1544 = vpack.c.b16 %v1390, %v1389
    %v1545 = vpack.c.b16 %v1392, %v1391
    %v1546 = vpack.c.b16 %v1394, %v1393
    %v1547 = vpack.c.b16 %v1396, %v1395
    %v1548 = vpack.c.b16 %v1398, %v1397
    %v1549 = vpack.c.b16 %v1400, %v1399
    %v1550 = vpack.c.b16 %v1402, %v1401
    %v1551 = vpack.c.b16 %v1404, %v1403
    %v1552 = vpack.c.b16 %v1406, %v1405
    %v1553 = vpack.c.b16 %v1408, %v1407
    %v1554 = vpack.c.b16 %v1410, %v1409
    %v1555 = vpack.c.b16 %v1412, %v1411
    %v1556 = vpack.c.b16 %v1414, %v1413
    %v1557 = vpack.c.b16 %v1416, %v1415
    %v1558 = vpack.c.b16 %v1418, %v1417
    %v1559 = vpack.c.b16 %v1420, %v1419
    %v1560 = vpack.c.b16 %v1422, %v1421
    %v1561 = vpack.c.b16 %v1424, %v1423
    %v1562 = vpack.c.b16 %v1426, %v1425
    %v1563 = vpack.c.b16 %v1428, %v1427
    %v1564 = vpack.c.b16 %v1430, %v1429
    %v1565 = vpack.c.b16 %v1432, %v1431
    %v1566 = vpack.c.b16 %v1434, %v1433
    %v1567 = vpack.c.b16 %v1436, %v1435
    %v1568 = vpack.c.b16 %v1438, %v1437
    %v1569 = vpack.c.b16 %v1440, %v1439
    %v1570 = vpack.c.b16 %v1442, %v1441
    %1699 = vst [vmem:[#allocation5] sm:$0xff] %v1443
    %1700 = vst [vmem:[#allocation5 + $0x8] sm:$0xff] %v1444
    %1701 = vst [vmem:[#allocation5 + $0x10] sm:$0xff] %v1445
    %1702 = vst [vmem:[#allocation5 + $0x18] sm:$0xff] %v1446
    %1703 = vst [vmem:[#allocation5 + $0x20] sm:$0xff] %v1447
    %1704 = vst [vmem:[#allocation5 + $0x28] sm:$0xff] %v1448
    %1705 = vst [vmem:[#allocation5 + $0x30] sm:$0xff] %v1449
    %1706 = vst [vmem:[#allocation5 + $0x38] sm:$0xff] %v1450
    %1707 = vst [vmem:[#allocation5 + $0x40] sm:$0xff] %v1451
    %1708 = vst [vmem:[#allocation5 + $0x48] sm:$0xff] %v1452
    %1709 = vst [vmem:[#allocation5 + $0x50] sm:$0xff] %v1453
    %1710 = vst [vmem:[#allocation5 + $0x58] sm:$0xff] %v1454
    %1711 = vst [vmem:[#allocation5 + $0x60] sm:$0xff] %v1455
    %1712 = vst [vmem:[#allocation5 + $0x68] sm:$0xff] %v1456
    %1713 = vst [vmem:[#allocation5 + $0x70] sm:$0xff] %v1457
    %1714 = vst [vmem:[#allocation5 + $0x78] sm:$0xff] %v1458
    %1715 = vst [vmem:[#allocation5 + $0x80] sm:$0xff] %v1459
    %1716 = vst [vmem:[#allocation5 + $0x88] sm:$0xff] %v1460
    %1717 = vst [vmem:[#allocation5 + $0x90] sm:$0xff] %v1461
    %1718 = vst [vmem:[#allocation5 + $0x98] sm:$0xff] %v1462
    %1719 = vst [vmem:[#allocation5 + $0xa0] sm:$0xff] %v1463
    %1720 = vst [vmem:[#allocation5 + $0xa8] sm:$0xff] %v1464
    %1721 = vst [vmem:[#allocation5 + $0xb0] sm:$0xff] %v1465
    %1722 = vst [vmem:[#allocation5 + $0xb8] sm:$0xff] %v1466
    %1723 = vst [vmem:[#allocation5 + $0xc0] sm:$0xff] %v1467
    %1724 = vst [vmem:[#allocation5 + $0xc8] sm:$0xff] %v1468
    %1725 = vst [vmem:[#allocation5 + $0xd0] sm:$0xff] %v1469
    %1726 = vst [vmem:[#allocation5 + $0xd8] sm:$0xff] %v1470
    %1727 = vst [vmem:[#allocation5 + $0xe0] sm:$0xff] %v1471
    %1728 = vst [vmem:[#allocation5 + $0xe8] sm:$0xff] %v1472
    %1729 = vst [vmem:[#allocation5 + $0xf0] sm:$0xff] %v1473
    %1730 = vst [vmem:[#allocation5 + $0xf8] sm:$0xff] %v1474
    %1731 = vst [vmem:[#allocation5 + $0x100] sm:$0xff] %v1475
    %1732 = vst [vmem:[#allocation5 + $0x108] sm:$0xff] %v1476
    %1733 = vst [vmem:[#allocation5 + $0x110] sm:$0xff] %v1477
    %1734 = vst [vmem:[#allocation5 + $0x118] sm:$0xff] %v1478
    %1735 = vst [vmem:[#allocation5 + $0x120] sm:$0xff] %v1479
    %1736 = vst [vmem:[#allocation5 + $0x128] sm:$0xff] %v1480
    %1737 = vst [vmem:[#allocation5 + $0x130] sm:$0xff] %v1481
    %1738 = vst [vmem:[#allocation5 + $0x138] sm:$0xff] %v1482
    %1739 = vst [vmem:[#allocation5 + $0x140] sm:$0xff] %v1483
    %1740 = vst [vmem:[#allocation5 + $0x148] sm:$0xff] %v1484
    %1741 = vst [vmem:[#allocation5 + $0x150] sm:$0xff] %v1485
    %1742 = vst [vmem:[#allocation5 + $0x158] sm:$0xff] %v1486
    %1743 = vst [vmem:[#allocation5 + $0x160] sm:$0xff] %v1487
    %1744 = vst [vmem:[#allocation5 + $0x168] sm:$0xff] %v1488
    %1745 = vst [vmem:[#allocation5 + $0x170] sm:$0xff] %v1489
    %1746 = vst [vmem:[#allocation5 + $0x178] sm:$0xff] %v1490
    %1747 = vst [vmem:[#allocation5 + $0x180] sm:$0xff] %v1491
    %1748 = vst [vmem:[#allocation5 + $0x188] sm:$0xff] %v1492
    %1749 = vst [vmem:[#allocation5 + $0x190] sm:$0xff] %v1493
    %1750 = vst [vmem:[#allocation5 + $0x198] sm:$0xff] %v1494
    %1751 = vst [vmem:[#allocation5 + $0x1a0] sm:$0xff] %v1495
    %1752 = vst [vmem:[#allocation5 + $0x1a8] sm:$0xff] %v1496
    %1753 = vst [vmem:[#allocation5 + $0x1b0] sm:$0xff] %v1497
    %1754 = vst [vmem:[#allocation5 + $0x1b8] sm:$0xff] %v1498
    %1755 = vst [vmem:[#allocation5 + $0x1c0] sm:$0xff] %v1499
    %1756 = vst [vmem:[#allocation5 + $0x1c8] sm:$0xff] %v1500
    %1757 = vst [vmem:[#allocation5 + $0x1d0] sm:$0xff] %v1501
    %1758 = vst [vmem:[#allocation5 + $0x1d8] sm:$0xff] %v1502
    %1759 = vst [vmem:[#allocation5 + $0x1e0] sm:$0xff] %v1503
    %1760 = vst [vmem:[#allocation5 + $0x1e8] sm:$0xff] %v1504
    %1761 = vst [vmem:[#allocation5 + $0x1f0] sm:$0xff] %v1505
    %1762 = vst [vmem:[#allocation5 + $0x1f8] sm:$0xff] %v1506
    %1763 = vst [vmem:[#allocation5 + $0x200] sm:$0xff] %v1507
    %1764 = vst [vmem:[#allocation5 + $0x208] sm:$0xff] %v1508
    %1765 = vst [vmem:[#allocation5 + $0x210] sm:$0xff] %v1509
    %1766 = vst [vmem:[#allocation5 + $0x218] sm:$0xff] %v1510
    %1767 = vst [vmem:[#allocation5 + $0x220] sm:$0xff] %v1511
    %1768 = vst [vmem:[#allocation5 + $0x228] sm:$0xff] %v1512
    %1769 = vst [vmem:[#allocation5 + $0x230] sm:$0xff] %v1513
    %1770 = vst [vmem:[#allocation5 + $0x238] sm:$0xff] %v1514
    %1771 = vst [vmem:[#allocation5 + $0x240] sm:$0xff] %v1515
    %1772 = vst [vmem:[#allocation5 + $0x248] sm:$0xff] %v1516
    %1773 = vst [vmem:[#allocation5 + $0x250] sm:$0xff] %v1517
    %1774 = vst [vmem:[#allocation5 + $0x258] sm:$0xff] %v1518
    %1775 = vst [vmem:[#allocation5 + $0x260] sm:$0xff] %v1519
    %1776 = vst [vmem:[#allocation5 + $0x268] sm:$0xff] %v1520
    %1777 = vst [vmem:[#allocation5 + $0x270] sm:$0xff] %v1521
    %1778 = vst [vmem:[#allocation5 + $0x278] sm:$0xff] %v1522
    %1779 = vst [vmem:[#allocation5 + $0x280] sm:$0xff] %v1523
    %1780 = vst [vmem:[#allocation5 + $0x288] sm:$0xff] %v1524
    %1781 = vst [vmem:[#allocation5 + $0x290] sm:$0xff] %v1525
    %1782 = vst [vmem:[#allocation5 + $0x298] sm:$0xff] %v1526
    %1783 = vst [vmem:[#allocation5 + $0x2a0] sm:$0xff] %v1527
    %1784 = vst [vmem:[#allocation5 + $0x2a8] sm:$0xff] %v1528
    %1785 = vst [vmem:[#allocation5 + $0x2b0] sm:$0xff] %v1529
    %1786 = vst [vmem:[#allocation5 + $0x2b8] sm:$0xff] %v1530
    %1787 = vst [vmem:[#allocation5 + $0x2c0] sm:$0xff] %v1531
    %1788 = vst [vmem:[#allocation5 + $0x2c8] sm:$0xff] %v1532
    %1789 = vst [vmem:[#allocation5 + $0x2d0] sm:$0xff] %v1533
    %1790 = vst [vmem:[#allocation5 + $0x2d8] sm:$0xff] %v1534
    %1791 = vst [vmem:[#allocation5 + $0x2e0] sm:$0xff] %v1535
    %1792 = vst [vmem:[#allocation5 + $0x2e8] sm:$0xff] %v1536
    %1793 = vst [vmem:[#allocation5 + $0x2f0] sm:$0xff] %v1537
    %1794 = vst [vmem:[#allocation5 + $0x2f8] sm:$0xff] %v1538
    %1795 = vst [vmem:[#allocation5 + $0x300] sm:$0xff] %v1539
    %1796 = vst [vmem:[#allocation5 + $0x308] sm:$0xff] %v1540
    %1797 = vst [vmem:[#allocation5 + $0x310] sm:$0xff] %v1541
    %1798 = vst [vmem:[#allocation5 + $0x318] sm:$0xff] %v1542
    %1799 = vst [vmem:[#allocation5 + $0x320] sm:$0xff] %v1543
    %1800 = vst [vmem:[#allocation5 + $0x328] sm:$0xff] %v1544
    %1801 = vst [vmem:[#allocation5 + $0x330] sm:$0xff] %v1545
    %1802 = vst [vmem:[#allocation5 + $0x338] sm:$0xff] %v1546
    %1803 = vst [vmem:[#allocation5 + $0x340] sm:$0xff] %v1547
    %1804 = vst [vmem:[#allocation5 + $0x348] sm:$0xff] %v1548
    %1805 = vst [vmem:[#allocation5 + $0x350] sm:$0xff] %v1549
    %1806 = vst [vmem:[#allocation5 + $0x358] sm:$0xff] %v1550
    %1807 = vst [vmem:[#allocation5 + $0x360] sm:$0xff] %v1551
    %1808 = vst [vmem:[#allocation5 + $0x368] sm:$0xff] %v1552
    %1809 = vst [vmem:[#allocation5 + $0x370] sm:$0xff] %v1553
    %1810 = vst [vmem:[#allocation5 + $0x378] sm:$0xff] %v1554
    %1811 = vst [vmem:[#allocation5 + $0x380] sm:$0xff] %v1555
    %1812 = vst [vmem:[#allocation5 + $0x388] sm:$0xff] %v1556
    %1813 = vst [vmem:[#allocation5 + $0x390] sm:$0xff] %v1557
    %1814 = vst [vmem:[#allocation5 + $0x398] sm:$0xff] %v1558
    %1815 = vst [vmem:[#allocation5 + $0x3a0] sm:$0xff] %v1559
    %1816 = vst [vmem:[#allocation5 + $0x3a8] sm:$0xff] %v1560
    %1817 = vst [vmem:[#allocation5 + $0x3b0] sm:$0xff] %v1561
    %1818 = vst [vmem:[#allocation5 + $0x3b8] sm:$0xff] %v1562
    %1819 = vst [vmem:[#allocation5 + $0x3c0] sm:$0xff] %v1563
    %1820 = vst [vmem:[#allocation5 + $0x3c8] sm:$0xff] %v1564
    %1821 = vst [vmem:[#allocation5 + $0x3d0] sm:$0xff] %v1565
    %1822 = vst [vmem:[#allocation5 + $0x3d8] sm:$0xff] %v1566
    %1823 = vst [vmem:[#allocation5 + $0x3e0] sm:$0xff] %v1567
    %1824 = vst [vmem:[#allocation5 + $0x3e8] sm:$0xff] %v1568
    %1825 = vst [vmem:[#allocation5 + $0x3f0] sm:$0xff] %v1569
    %1826 = vst [vmem:[#allocation5 + $0x3f8] sm:$0xff] %v1570
    %v1827 = vadd.f32 %v675, %v676
    %v1828 = vadd.f32 %v1827, %v677
    %v1829 = vadd.f32 %v1828, %v678
    %1830 = vadd.xlane.f32.xlu0 %v1829
    %v1831 = vpop.xlane.xlu0 %1830
    %v1832 = vadd.f32 %v679, %v680
    %v1833 = vadd.f32 %v1832, %v681
    %v1834 = vadd.f32 %v1833, %v682
    %1835 = vadd.xlane.f32.xlu0 %v1834
    %v1836 = vpop.xlane.xlu0 %1835
    %v1837 = vadd.f32 %v683, %v684
    %v1838 = vadd.f32 %v1837, %v685
    %v1839 = vadd.f32 %v1838, %v686
    %1840 = vadd.xlane.f32.xlu0 %v1839
    %v1841 = vpop.xlane.xlu0 %1840
    %v1842 = vadd.f32 %v687, %v688
    %v1843 = vadd.f32 %v1842, %v689
    %v1844 = vadd.f32 %v1843, %v690
    %1845 = vadd.xlane.f32.xlu0 %v1844
    %v1846 = vpop.xlane.xlu0 %1845
    %v1847 = vadd.f32 %v691, %v692
    %v1848 = vadd.f32 %v1847, %v693
    %v1849 = vadd.f32 %v1848, %v694
    %1850 = vadd.xlane.f32.xlu0 %v1849
    %v1851 = vpop.xlane.xlu0 %1850
    %v1852 = vadd.f32 %v695, %v696
    %v1853 = vadd.f32 %v1852, %v697
    %v1854 = vadd.f32 %v1853, %v698
    %1855 = vadd.xlane.f32.xlu0 %v1854
    %v1856 = vpop.xlane.xlu0 %1855
    %v1857 = vadd.f32 %v699, %v700
    %v1858 = vadd.f32 %v1857, %v701
    %v1859 = vadd.f32 %v1858, %v702
    %1860 = vadd.xlane.f32.xlu0 %v1859
    %v1861 = vpop.xlane.xlu0 %1860
    %v1862 = vadd.f32 %v703, %v704
    %v1863 = vadd.f32 %v1862, %v705
    %v1864 = vadd.f32 %v1863, %v706
    %1865 = vadd.xlane.f32.xlu0 %v1864
    %v1866 = vpop.xlane.xlu0 %1865
    %v1867 = vadd.f32 %v707, %v708
    %v1868 = vadd.f32 %v1867, %v709
    %v1869 = vadd.f32 %v1868, %v710
    %1870 = vadd.xlane.f32.xlu0 %v1869
    %v1871 = vpop.xlane.xlu0 %1870
    %v1872 = vadd.f32 %v711, %v712
    %v1873 = vadd.f32 %v1872, %v713
    %v1874 = vadd.f32 %v1873, %v714
    %1875 = vadd.xlane.f32.xlu0 %v1874
    %v1876 = vpop.xlane.xlu0 %1875
    %v1877 = vadd.f32 %v715, %v716
    %v1878 = vadd.f32 %v1877, %v717
    %v1879 = vadd.f32 %v1878, %v718
    %1880 = vadd.xlane.f32.xlu0 %v1879
    %v1881 = vpop.xlane.xlu0 %1880
    %v1882 = vadd.f32 %v719, %v720
    %v1883 = vadd.f32 %v1882, %v721
    %v1884 = vadd.f32 %v1883, %v722
    %1885 = vadd.xlane.f32.xlu0 %v1884
    %v1886 = vpop.xlane.xlu0 %1885
    %v1887 = vadd.f32 %v723, %v724
    %v1888 = vadd.f32 %v1887, %v725
    %v1889 = vadd.f32 %v1888, %v726
    %1890 = vadd.xlane.f32.xlu0 %v1889
    %v1891 = vpop.xlane.xlu0 %1890
    %v1892 = vadd.f32 %v727, %v728
    %v1893 = vadd.f32 %v1892, %v729
    %v1894 = vadd.f32 %v1893, %v730
    %1895 = vadd.xlane.f32.xlu0 %v1894
    %v1896 = vpop.xlane.xlu0 %1895
    %v1897 = vadd.f32 %v731, %v732
    %v1898 = vadd.f32 %v1897, %v733
    %v1899 = vadd.f32 %v1898, %v734
    %1900 = vadd.xlane.f32.xlu0 %v1899
    %v1901 = vpop.xlane.xlu0 %1900
    %v1902 = vadd.f32 %v735, %v736
    %v1903 = vadd.f32 %v1902, %v737
    %v1904 = vadd.f32 %v1903, %v738
    %1905 = vadd.xlane.f32.xlu0 %v1904
    %v1906 = vpop.xlane.xlu0 %1905
    %v1907 = vadd.f32 %v739, %v740
    %v1908 = vadd.f32 %v1907, %v741
    %v1909 = vadd.f32 %v1908, %v742
    %1910 = vadd.xlane.f32.xlu0 %v1909
    %v1911 = vpop.xlane.xlu0 %1910
    %v1912 = vadd.f32 %v743, %v744
    %v1913 = vadd.f32 %v1912, %v745
    %v1914 = vadd.f32 %v1913, %v746
    %1915 = vadd.xlane.f32.xlu0 %v1914
    %v1916 = vpop.xlane.xlu0 %1915
    %v1917 = vadd.f32 %v747, %v748
    %v1918 = vadd.f32 %v1917, %v749
    %v1919 = vadd.f32 %v1918, %v750
    %1920 = vadd.xlane.f32.xlu0 %v1919
    %v1921 = vpop.xlane.xlu0 %1920
    %v1922 = vadd.f32 %v751, %v752
    %v1923 = vadd.f32 %v1922, %v753
    %v1924 = vadd.f32 %v1923, %v754
    %1925 = vadd.xlane.f32.xlu0 %v1924
    %v1926 = vpop.xlane.xlu0 %1925
    %v1927 = vadd.f32 %v755, %v756
    %v1928 = vadd.f32 %v1927, %v757
    %v1929 = vadd.f32 %v1928, %v758
    %1930 = vadd.xlane.f32.xlu0 %v1929
    %v1931 = vpop.xlane.xlu0 %1930
    %v1932 = vadd.f32 %v759, %v760
    %v1933 = vadd.f32 %v1932, %v761
    %v1934 = vadd.f32 %v1933, %v762
    %1935 = vadd.xlane.f32.xlu0 %v1934
    %v1936 = vpop.xlane.xlu0 %1935
    %v1937 = vadd.f32 %v763, %v764
    %v1938 = vadd.f32 %v1937, %v765
    %v1939 = vadd.f32 %v1938, %v766
    %1940 = vadd.xlane.f32.xlu0 %v1939
    %v1941 = vpop.xlane.xlu0 %1940
    %v1942 = vadd.f32 %v767, %v768
    %v1943 = vadd.f32 %v1942, %v769
    %v1944 = vadd.f32 %v1943, %v770
    %1945 = vadd.xlane.f32.xlu0 %v1944
    %v1946 = vpop.xlane.xlu0 %1945
    %v1947 = vadd.f32 %v771, %v772
    %v1948 = vadd.f32 %v1947, %v773
    %v1949 = vadd.f32 %v1948, %v774
    %1950 = vadd.xlane.f32.xlu0 %v1949
    %v1951 = vpop.xlane.xlu0 %1950
    %v1952 = vadd.f32 %v775, %v776
    %v1953 = vadd.f32 %v1952, %v777
    %v1954 = vadd.f32 %v1953, %v778
    %1955 = vadd.xlane.f32.xlu0 %v1954
    %v1956 = vpop.xlane.xlu0 %1955
    %v1957 = vadd.f32 %v779, %v780
    %v1958 = vadd.f32 %v1957, %v781
    %v1959 = vadd.f32 %v1958, %v782
    %1960 = vadd.xlane.f32.xlu0 %v1959
    %v1961 = vpop.xlane.xlu0 %1960
    %v1962 = vadd.f32 %v783, %v784
    %v1963 = vadd.f32 %v1962, %v785
    %v1964 = vadd.f32 %v1963, %v786
    %1965 = vadd.xlane.f32.xlu0 %v1964
    %v1966 = vpop.xlane.xlu0 %1965
    %v1967 = vadd.f32 %v787, %v788
    %v1968 = vadd.f32 %v1967, %v789
    %v1969 = vadd.f32 %v1968, %v790
    %1970 = vadd.xlane.f32.xlu0 %v1969
    %v1971 = vpop.xlane.xlu0 %1970
    %v1972 = vadd.f32 %v791, %v792
    %v1973 = vadd.f32 %v1972, %v793
    %v1974 = vadd.f32 %v1973, %v794
    %1975 = vadd.xlane.f32.xlu0 %v1974
    %v1976 = vpop.xlane.xlu0 %1975
    %v1977 = vadd.f32 %v795, %v796
    %v1978 = vadd.f32 %v1977, %v797
    %v1979 = vadd.f32 %v1978, %v798
    %1980 = vadd.xlane.f32.xlu0 %v1979
    %v1981 = vpop.xlane.xlu0 %1980
    %v1982 = vadd.f32 %v799, %v800
    %v1983 = vadd.f32 %v1982, %v801
    %v1984 = vadd.f32 %v1983, %v802
    %1985 = vadd.xlane.f32.xlu0 %v1984
    %v1986 = vpop.xlane.xlu0 %1985
    %v1987 = vadd.f32 %v803, %v804
    %v1988 = vadd.f32 %v1987, %v805
    %v1989 = vadd.f32 %v1988, %v806
    %1990 = vadd.xlane.f32.xlu0 %v1989
    %v1991 = vpop.xlane.xlu0 %1990
    %v1992 = vadd.f32 %v807, %v808
    %v1993 = vadd.f32 %v1992, %v809
    %v1994 = vadd.f32 %v1993, %v810
    %1995 = vadd.xlane.f32.xlu0 %v1994
    %v1996 = vpop.xlane.xlu0 %1995
    %v1997 = vadd.f32 %v811, %v812
    %v1998 = vadd.f32 %v1997, %v813
    %v1999 = vadd.f32 %v1998, %v814
    %2000 = vadd.xlane.f32.xlu0 %v1999
    %v2001 = vpop.xlane.xlu0 %2000
    %v2002 = vadd.f32 %v815, %v816
    %v2003 = vadd.f32 %v2002, %v817
    %v2004 = vadd.f32 %v2003, %v818
    %2005 = vadd.xlane.f32.xlu0 %v2004
    %v2006 = vpop.xlane.xlu0 %2005
    %v2007 = vadd.f32 %v819, %v820
    %v2008 = vadd.f32 %v2007, %v821
    %v2009 = vadd.f32 %v2008, %v822
    %2010 = vadd.xlane.f32.xlu0 %v2009
    %v2011 = vpop.xlane.xlu0 %2010
    %v2012 = vadd.f32 %v823, %v824
    %v2013 = vadd.f32 %v2012, %v825
    %v2014 = vadd.f32 %v2013, %v826
    %2015 = vadd.xlane.f32.xlu0 %v2014
    %v2016 = vpop.xlane.xlu0 %2015
    %v2017 = vadd.f32 %v827, %v828
    %v2018 = vadd.f32 %v2017, %v829
    %v2019 = vadd.f32 %v2018, %v830
    %2020 = vadd.xlane.f32.xlu0 %v2019
    %v2021 = vpop.xlane.xlu0 %2020
    %v2022 = vadd.f32 %v831, %v832
    %v2023 = vadd.f32 %v2022, %v833
    %v2024 = vadd.f32 %v2023, %v834
    %2025 = vadd.xlane.f32.xlu0 %v2024
    %v2026 = vpop.xlane.xlu0 %2025
    %v2027 = vadd.f32 %v835, %v836
    %v2028 = vadd.f32 %v2027, %v837
    %v2029 = vadd.f32 %v2028, %v838
    %2030 = vadd.xlane.f32.xlu0 %v2029
    %v2031 = vpop.xlane.xlu0 %2030
    %v2032 = vadd.f32 %v839, %v840
    %v2033 = vadd.f32 %v2032, %v841
    %v2034 = vadd.f32 %v2033, %v842
    %2035 = vadd.xlane.f32.xlu0 %v2034
    %v2036 = vpop.xlane.xlu0 %2035
    %v2037 = vadd.f32 %v843, %v844
    %v2038 = vadd.f32 %v2037, %v845
    %v2039 = vadd.f32 %v2038, %v846
    %2040 = vadd.xlane.f32.xlu0 %v2039
    %v2041 = vpop.xlane.xlu0 %2040
    %v2042 = vadd.f32 %v847, %v848
    %v2043 = vadd.f32 %v2042, %v849
    %v2044 = vadd.f32 %v2043, %v850
    %2045 = vadd.xlane.f32.xlu0 %v2044
    %v2046 = vpop.xlane.xlu0 %2045
    %v2047 = vadd.f32 %v851, %v852
    %v2048 = vadd.f32 %v2047, %v853
    %v2049 = vadd.f32 %v2048, %v854
    %2050 = vadd.xlane.f32.xlu0 %v2049
    %v2051 = vpop.xlane.xlu0 %2050
    %v2052 = vadd.f32 %v855, %v856
    %v2053 = vadd.f32 %v2052, %v857
    %v2054 = vadd.f32 %v2053, %v858
    %2055 = vadd.xlane.f32.xlu0 %v2054
    %v2056 = vpop.xlane.xlu0 %2055
    %v2057 = vadd.f32 %v859, %v860
    %v2058 = vadd.f32 %v2057, %v861
    %v2059 = vadd.f32 %v2058, %v862
    %2060 = vadd.xlane.f32.xlu0 %v2059
    %v2061 = vpop.xlane.xlu0 %2060
    %v2062 = vadd.f32 %v863, %v864
    %v2063 = vadd.f32 %v2062, %v865
    %v2064 = vadd.f32 %v2063, %v866
    %2065 = vadd.xlane.f32.xlu0 %v2064
    %v2066 = vpop.xlane.xlu0 %2065
    %v2067 = vadd.f32 %v867, %v868
    %v2068 = vadd.f32 %v2067, %v869
    %v2069 = vadd.f32 %v2068, %v870
    %2070 = vadd.xlane.f32.xlu0 %v2069
    %v2071 = vpop.xlane.xlu0 %2070
    %v2072 = vadd.f32 %v871, %v872
    %v2073 = vadd.f32 %v2072, %v873
    %v2074 = vadd.f32 %v2073, %v874
    %2075 = vadd.xlane.f32.xlu0 %v2074
    %v2076 = vpop.xlane.xlu0 %2075
    %v2077 = vadd.f32 %v875, %v876
    %v2078 = vadd.f32 %v2077, %v877
    %v2079 = vadd.f32 %v2078, %v878
    %2080 = vadd.xlane.f32.xlu0 %v2079
    %v2081 = vpop.xlane.xlu0 %2080
    %v2082 = vadd.f32 %v879, %v880
    %v2083 = vadd.f32 %v2082, %v881
    %v2084 = vadd.f32 %v2083, %v882
    %2085 = vadd.xlane.f32.xlu0 %v2084
    %v2086 = vpop.xlane.xlu0 %2085
    %v2087 = vadd.f32 %v883, %v884
    %v2088 = vadd.f32 %v2087, %v885
    %v2089 = vadd.f32 %v2088, %v886
    %2090 = vadd.xlane.f32.xlu0 %v2089
    %v2091 = vpop.xlane.xlu0 %2090
    %v2092 = vadd.f32 %v887, %v888
    %v2093 = vadd.f32 %v2092, %v889
    %v2094 = vadd.f32 %v2093, %v890
    %2095 = vadd.xlane.f32.xlu0 %v2094
    %v2096 = vpop.xlane.xlu0 %2095
    %v2097 = vadd.f32 %v891, %v892
    %v2098 = vadd.f32 %v2097, %v893
    %v2099 = vadd.f32 %v2098, %v894
    %2100 = vadd.xlane.f32.xlu0 %v2099
    %v2101 = vpop.xlane.xlu0 %2100
    %v2102 = vadd.f32 %v895, %v896
    %v2103 = vadd.f32 %v2102, %v897
    %v2104 = vadd.f32 %v2103, %v898
    %2105 = vadd.xlane.f32.xlu0 %v2104
    %v2106 = vpop.xlane.xlu0 %2105
    %v2107 = vadd.f32 %v899, %v900
    %v2108 = vadd.f32 %v2107, %v901
    %v2109 = vadd.f32 %v2108, %v902
    %2110 = vadd.xlane.f32.xlu0 %v2109
    %v2111 = vpop.xlane.xlu0 %2110
    %v2112 = vadd.f32 %v903, %v904
    %v2113 = vadd.f32 %v2112, %v905
    %v2114 = vadd.f32 %v2113, %v906
    %2115 = vadd.xlane.f32.xlu0 %v2114
    %v2116 = vpop.xlane.xlu0 %2115
    %v2117 = vadd.f32 %v907, %v908
    %v2118 = vadd.f32 %v2117, %v909
    %v2119 = vadd.f32 %v2118, %v910
    %2120 = vadd.xlane.f32.xlu0 %v2119
    %v2121 = vpop.xlane.xlu0 %2120
    %v2122 = vadd.f32 %v911, %v912
    %v2123 = vadd.f32 %v2122, %v913
    %v2124 = vadd.f32 %v2123, %v914
    %2125 = vadd.xlane.f32.xlu0 %v2124
    %v2126 = vpop.xlane.xlu0 %2125
    %v2127 = vadd.f32 %v915, %v916
    %v2128 = vadd.f32 %v2127, %v917
    %v2129 = vadd.f32 %v2128, %v918
    %2130 = vadd.xlane.f32.xlu0 %v2129
    %v2131 = vpop.xlane.xlu0 %2130
    %v2132 = vadd.f32 %v919, %v920
    %v2133 = vadd.f32 %v2132, %v921
    %v2134 = vadd.f32 %v2133, %v922
    %2135 = vadd.xlane.f32.xlu0 %v2134
    %v2136 = vpop.xlane.xlu0 %2135
    %v2137 = vadd.f32 %v923, %v924
    %v2138 = vadd.f32 %v2137, %v925
    %v2139 = vadd.f32 %v2138, %v926
    %2140 = vadd.xlane.f32.xlu0 %v2139
    %v2141 = vpop.xlane.xlu0 %2140
    %v2142 = vadd.f32 %v927, %v928
    %v2143 = vadd.f32 %v2142, %v929
    %v2144 = vadd.f32 %v2143, %v930
    %2145 = vadd.xlane.f32.xlu0 %v2144
    %v2146 = vpop.xlane.xlu0 %2145
    %vm2147 = vcmask 7168
    %2148 = vst.msk [vmem:[%s2] sm:$0xff] %vm2147, %v1831
    %2149 = vst.msk [vmem:[%s2 + $0x8] sm:$0xff] %vm2147, %v1836
    %2150 = vst.msk [vmem:[%s2 + $0x10] sm:$0xff] %vm2147, %v1841
    %2151 = vst.msk [vmem:[%s2 + $0x18] sm:$0xff] %vm2147, %v1846
    %2152 = vst.msk [vmem:[%s2 + $0x20] sm:$0xff] %vm2147, %v1851
    %2153 = vst.msk [vmem:[%s2 + $0x28] sm:$0xff] %vm2147, %v1856
    %2154 = vst.msk [vmem:[%s2 + $0x30] sm:$0xff] %vm2147, %v1861
    %2155 = vst.msk [vmem:[%s2 + $0x38] sm:$0xff] %vm2147, %v1866
    %2156 = vst.msk [vmem:[%s2 + $0x40] sm:$0xff] %vm2147, %v1871
    %2157 = vst.msk [vmem:[%s2 + $0x48] sm:$0xff] %vm2147, %v1876
    %2158 = vst.msk [vmem:[%s2 + $0x50] sm:$0xff] %vm2147, %v1881
    %2159 = vst.msk [vmem:[%s2 + $0x58] sm:$0xff] %vm2147, %v1886
    %2160 = vst.msk [vmem:[%s2 + $0x60] sm:$0xff] %vm2147, %v1891
    %2161 = vst.msk [vmem:[%s2 + $0x68] sm:$0xff] %vm2147, %v1896
    %2162 = vst.msk [vmem:[%s2 + $0x70] sm:$0xff] %vm2147, %v1901
    %2163 = vst.msk [vmem:[%s2 + $0x78] sm:$0xff] %vm2147, %v1906
    %2164 = vst.msk [vmem:[%s2 + $0x80] sm:$0xff] %vm2147, %v1911
    %2165 = vst.msk [vmem:[%s2 + $0x88] sm:$0xff] %vm2147, %v1916
    %2166 = vst.msk [vmem:[%s2 + $0x90] sm:$0xff] %vm2147, %v1921
    %2167 = vst.msk [vmem:[%s2 + $0x98] sm:$0xff] %vm2147, %v1926
    %2168 = vst.msk [vmem:[%s2 + $0xa0] sm:$0xff] %vm2147, %v1931
    %2169 = vst.msk [vmem:[%s2 + $0xa8] sm:$0xff] %vm2147, %v1936
    %2170 = vst.msk [vmem:[%s2 + $0xb0] sm:$0xff] %vm2147, %v1941
    %2171 = vst.msk [vmem:[%s2 + $0xb8] sm:$0xff] %vm2147, %v1946
    %2172 = vst.msk [vmem:[%s2 + $0xc0] sm:$0xff] %vm2147, %v1951
    %2173 = vst.msk [vmem:[%s2 + $0xc8] sm:$0xff] %vm2147, %v1956
    %2174 = vst.msk [vmem:[%s2 + $0xd0] sm:$0xff] %vm2147, %v1961
    %2175 = vst.msk [vmem:[%s2 + $0xd8] sm:$0xff] %vm2147, %v1966
    %2176 = vst.msk [vmem:[%s2 + $0xe0] sm:$0xff] %vm2147, %v1971
    %2177 = vst.msk [vmem:[%s2 + $0xe8] sm:$0xff] %vm2147, %v1976
    %2178 = vst.msk [vmem:[%s2 + $0xf0] sm:$0xff] %vm2147, %v1981
    %2179 = vst.msk [vmem:[%s2 + $0xf8] sm:$0xff] %vm2147, %v1986
    %2180 = vst.msk [vmem:[%s2 + $0x100] sm:$0xff] %vm2147, %v1991
    %2181 = vst.msk [vmem:[%s2 + $0x108] sm:$0xff] %vm2147, %v1996
    %2182 = vst.msk [vmem:[%s2 + $0x110] sm:$0xff] %vm2147, %v2001
    %2183 = vst.msk [vmem:[%s2 + $0x118] sm:$0xff] %vm2147, %v2006
    %2184 = vst.msk [vmem:[%s2 + $0x120] sm:$0xff] %vm2147, %v2011
    %2185 = vst.msk [vmem:[%s2 + $0x128] sm:$0xff] %vm2147, %v2016
    %2186 = vst.msk [vmem:[%s2 + $0x130] sm:$0xff] %vm2147, %v2021
    %2187 = vst.msk [vmem:[%s2 + $0x138] sm:$0xff] %vm2147, %v2026
    %2188 = vst.msk [vmem:[%s2 + $0x140] sm:$0xff] %vm2147, %v2031
    %2189 = vst.msk [vmem:[%s2 + $0x148] sm:$0xff] %vm2147, %v2036
    %2190 = vst.msk [vmem:[%s2 + $0x150] sm:$0xff] %vm2147, %v2041
    %2191 = vst.msk [vmem:[%s2 + $0x158] sm:$0xff] %vm2147, %v2046
    %2192 = vst.msk [vmem:[%s2 + $0x160] sm:$0xff] %vm2147, %v2051
    %2193 = vst.msk [vmem:[%s2 + $0x168] sm:$0xff] %vm2147, %v2056
    %2194 = vst.msk [vmem:[%s2 + $0x170] sm:$0xff] %vm2147, %v2061
    %2195 = vst.msk [vmem:[%s2 + $0x178] sm:$0xff] %vm2147, %v2066
    %2196 = vst.msk [vmem:[%s2 + $0x180] sm:$0xff] %vm2147, %v2071
    %2197 = vst.msk [vmem:[%s2 + $0x188] sm:$0xff] %vm2147, %v2076
    %2198 = vst.msk [vmem:[%s2 + $0x190] sm:$0xff] %vm2147, %v2081
    %2199 = vst.msk [vmem:[%s2 + $0x198] sm:$0xff] %vm2147, %v2086
    %2200 = vst.msk [vmem:[%s2 + $0x1a0] sm:$0xff] %vm2147, %v2091
    %2201 = vst.msk [vmem:[%s2 + $0x1a8] sm:$0xff] %vm2147, %v2096
    %2202 = vst.msk [vmem:[%s2 + $0x1b0] sm:$0xff] %vm2147, %v2101
    %2203 = vst.msk [vmem:[%s2 + $0x1b8] sm:$0xff] %vm2147, %v2106
    %2204 = vst.msk [vmem:[%s2 + $0x1c0] sm:$0xff] %vm2147, %v2111
    %2205 = vst.msk [vmem:[%s2 + $0x1c8] sm:$0xff] %vm2147, %v2116
    %2206 = vst.msk [vmem:[%s2 + $0x1d0] sm:$0xff] %vm2147, %v2121
    %2207 = vst.msk [vmem:[%s2 + $0x1d8] sm:$0xff] %vm2147, %v2126
    %2208 = vst.msk [vmem:[%s2 + $0x1e0] sm:$0xff] %vm2147, %v2131
    %2209 = vst.msk [vmem:[%s2 + $0x1e8] sm:$0xff] %vm2147, %v2136
    %2210 = vst.msk [vmem:[%s2 + $0x1f0] sm:$0xff] %vm2147, %v2141
    %2211 = vst.msk [vmem:[%s2 + $0x1f8] sm:$0xff] %vm2147, %v2146
    %v2212 = vadd.f32 %v675, %v679
    %v2213 = vadd.f32 %v2212, %v683
    %v2214 = vadd.f32 %v2213, %v687
    %v2215 = vadd.f32 %v2214, %v691
    %v2216 = vadd.f32 %v2215, %v695
    %v2217 = vadd.f32 %v2216, %v699
    %v2218 = vadd.f32 %v2217, %v703
    %v2219 = vadd.f32 %v2218, %v707
    %v2220 = vadd.f32 %v2219, %v711
    %v2221 = vadd.f32 %v2220, %v715
    %v2222 = vadd.f32 %v2221, %v719
    %v2223 = vadd.f32 %v2222, %v723
    %v2224 = vadd.f32 %v2223, %v727
    %v2225 = vadd.f32 %v2224, %v731
    %v2226 = vadd.f32 %v2225, %v735
    %v2227 = vadd.f32 %v2226, %v739
    %v2228 = vadd.f32 %v2227, %v743
    %v2229 = vadd.f32 %v2228, %v747
    %v2230 = vadd.f32 %v2229, %v751
    %v2231 = vadd.f32 %v2230, %v755
    %v2232 = vadd.f32 %v2231, %v759
    %v2233 = vadd.f32 %v2232, %v763
    %v2234 = vadd.f32 %v2233, %v767
    %v2235 = vadd.f32 %v2234, %v771
    %v2236 = vadd.f32 %v2235, %v775
    %v2237 = vadd.f32 %v2236, %v779
    %v2238 = vadd.f32 %v2237, %v783
    %v2239 = vadd.f32 %v2238, %v787
    %v2240 = vadd.f32 %v2239, %v791
    %v2241 = vadd.f32 %v2240, %v795
    %v2242 = vadd.f32 %v2241, %v799
    %v2243 = vadd.f32 %v2242, %v803
    %v2244 = vadd.f32 %v2243, %v807
    %v2245 = vadd.f32 %v2244, %v811
    %v2246 = vadd.f32 %v2245, %v815
    %v2247 = vadd.f32 %v2246, %v819
    %v2248 = vadd.f32 %v2247, %v823
    %v2249 = vadd.f32 %v2248, %v827
    %v2250 = vadd.f32 %v2249, %v831
    %v2251 = vadd.f32 %v2250, %v835
    %v2252 = vadd.f32 %v2251, %v839
    %v2253 = vadd.f32 %v2252, %v843
    %v2254 = vadd.f32 %v2253, %v847
    %v2255 = vadd.f32 %v2254, %v851
    %v2256 = vadd.f32 %v2255, %v855
    %v2257 = vadd.f32 %v2256, %v859
    %v2258 = vadd.f32 %v2257, %v863
    %v2259 = vadd.f32 %v2258, %v867
    %v2260 = vadd.f32 %v2259, %v871
    %v2261 = vadd.f32 %v2260, %v875
    %v2262 = vadd.f32 %v2261, %v879
    %v2263 = vadd.f32 %v2262, %v883
    %v2264 = vadd.f32 %v2263, %v887
    %v2265 = vadd.f32 %v2264, %v891
    %v2266 = vadd.f32 %v2265, %v895
    %v2267 = vadd.f32 %v2266, %v899
    %v2268 = vadd.f32 %v2267, %v903
    %v2269 = vadd.f32 %v2268, %v907
    %v2270 = vadd.f32 %v2269, %v911
    %v2271 = vadd.f32 %v2270, %v915
    %v2272 = vadd.f32 %v2271, %v919
    %v2273 = vadd.f32 %v2272, %v923
    %v2274 = vadd.f32 %v2273, %v927
    %v2275 = vrot.slane %v2274, 4
    %v2276 = vadd.f32 %v2274, %v2275
    %v2277 = vrot.slane %v2276, 2
    %v2278 = vadd.f32 %v2276, %v2277
    %v2279 = vrot.slane %v2278, 1
    %v2280 = vadd.f32 %v2278, %v2279
    %v2281 = vadd.f32 %v676, %v680
    %v2282 = vadd.f32 %v2281, %v684
    %v2283 = vadd.f32 %v2282, %v688
    %v2284 = vadd.f32 %v2283, %v692
    %v2285 = vadd.f32 %v2284, %v696
    %v2286 = vadd.f32 %v2285, %v700
    %v2287 = vadd.f32 %v2286, %v704
    %v2288 = vadd.f32 %v2287, %v708
    %v2289 = vadd.f32 %v2288, %v712
    %v2290 = vadd.f32 %v2289, %v716
    %v2291 = vadd.f32 %v2290, %v720
    %v2292 = vadd.f32 %v2291, %v724
    %v2293 = vadd.f32 %v2292, %v728
    %v2294 = vadd.f32 %v2293, %v732
    %v2295 = vadd.f32 %v2294, %v736
    %v2296 = vadd.f32 %v2295, %v740
    %v2297 = vadd.f32 %v2296, %v744
    %v2298 = vadd.f32 %v2297, %v748
    %v2299 = vadd.f32 %v2298, %v752
    %v2300 = vadd.f32 %v2299, %v756
    %v2301 = vadd.f32 %v2300, %v760
    %v2302 = vadd.f32 %v2301, %v764
    %v2303 = vadd.f32 %v2302, %v768
    %v2304 = vadd.f32 %v2303, %v772
    %v2305 = vadd.f32 %v2304, %v776
    %v2306 = vadd.f32 %v2305, %v780
    %v2307 = vadd.f32 %v2306, %v784
    %v2308 = vadd.f32 %v2307, %v788
    %v2309 = vadd.f32 %v2308, %v792
    %v2310 = vadd.f32 %v2309, %v796
    %v2311 = vadd.f32 %v2310, %v800
    %v2312 = vadd.f32 %v2311, %v804
    %v2313 = vadd.f32 %v2312, %v808
    %v2314 = vadd.f32 %v2313, %v812
    %v2315 = vadd.f32 %v2314, %v816
    %v2316 = vadd.f32 %v2315, %v820
    %v2317 = vadd.f32 %v2316, %v824
    %v2318 = vadd.f32 %v2317, %v828
    %v2319 = vadd.f32 %v2318, %v832
    %v2320 = vadd.f32 %v2319, %v836
    %v2321 = vadd.f32 %v2320, %v840
    %v2322 = vadd.f32 %v2321, %v844
    %v2323 = vadd.f32 %v2322, %v848
    %v2324 = vadd.f32 %v2323, %v852
    %v2325 = vadd.f32 %v2324, %v856
    %v2326 = vadd.f32 %v2325, %v860
    %v2327 = vadd.f32 %v2326, %v864
    %v2328 = vadd.f32 %v2327, %v868
    %v2329 = vadd.f32 %v2328, %v872
    %v2330 = vadd.f32 %v2329, %v876
    %v2331 = vadd.f32 %v2330, %v880
    %v2332 = vadd.f32 %v2331, %v884
    %v2333 = vadd.f32 %v2332, %v888
    %v2334 = vadd.f32 %v2333, %v892
    %v2335 = vadd.f32 %v2334, %v896
    %v2336 = vadd.f32 %v2335, %v900
    %v2337 = vadd.f32 %v2336, %v904
    %v2338 = vadd.f32 %v2337, %v908
    %v2339 = vadd.f32 %v2338, %v912
    %v2340 = vadd.f32 %v2339, %v916
    %v2341 = vadd.f32 %v2340, %v920
    %v2342 = vadd.f32 %v2341, %v924
    %v2343 = vadd.f32 %v2342, %v928
    %v2344 = vrot.slane %v2343, 4
    %v2345 = vadd.f32 %v2343, %v2344
    %v2346 = vrot.slane %v2345, 2
    %v2347 = vadd.f32 %v2345, %v2346
    %v2348 = vrot.slane %v2347, 1
    %v2349 = vadd.f32 %v2347, %v2348
    %v2350 = vadd.f32 %v677, %v681
    %v2351 = vadd.f32 %v2350, %v685
    %v2352 = vadd.f32 %v2351, %v689
    %v2353 = vadd.f32 %v2352, %v693
    %v2354 = vadd.f32 %v2353, %v697
    %v2355 = vadd.f32 %v2354, %v701
    %v2356 = vadd.f32 %v2355, %v705
    %v2357 = vadd.f32 %v2356, %v709
    %v2358 = vadd.f32 %v2357, %v713
    %v2359 = vadd.f32 %v2358, %v717
    %v2360 = vadd.f32 %v2359, %v721
    %v2361 = vadd.f32 %v2360, %v725
    %v2362 = vadd.f32 %v2361, %v729
    %v2363 = vadd.f32 %v2362, %v733
    %v2364 = vadd.f32 %v2363, %v737
    %v2365 = vadd.f32 %v2364, %v741
    %v2366 = vadd.f32 %v2365, %v745
    %v2367 = vadd.f32 %v2366, %v749
    %v2368 = vadd.f32 %v2367, %v753
    %v2369 = vadd.f32 %v2368, %v757
    %v2370 = vadd.f32 %v2369, %v761
    %v2371 = vadd.f32 %v2370, %v765
    %v2372 = vadd.f32 %v2371, %v769
    %v2373 = vadd.f32 %v2372, %v773
    %v2374 = vadd.f32 %v2373, %v777
    %v2375 = vadd.f32 %v2374, %v781
    %v2376 = vadd.f32 %v2375, %v785
    %v2377 = vadd.f32 %v2376, %v789
    %v2378 = vadd.f32 %v2377, %v793
    %v2379 = vadd.f32 %v2378, %v797
    %v2380 = vadd.f32 %v2379, %v801
    %v2381 = vadd.f32 %v2380, %v805
    %v2382 = vadd.f32 %v2381, %v809
    %v2383 = vadd.f32 %v2382, %v813
    %v2384 = vadd.f32 %v2383, %v817
    %v2385 = vadd.f32 %v2384, %v821
    %v2386 = vadd.f32 %v2385, %v825
    %v2387 = vadd.f32 %v2386, %v829
    %v2388 = vadd.f32 %v2387, %v833
    %v2389 = vadd.f32 %v2388, %v837
    %v2390 = vadd.f32 %v2389, %v841
    %v2391 = vadd.f32 %v2390, %v845
    %v2392 = vadd.f32 %v2391, %v849
    %v2393 = vadd.f32 %v2392, %v853
    %v2394 = vadd.f32 %v2393, %v857
    %v2395 = vadd.f32 %v2394, %v861
    %v2396 = vadd.f32 %v2395, %v865
    %v2397 = vadd.f32 %v2396, %v869
    %v2398 = vadd.f32 %v2397, %v873
    %v2399 = vadd.f32 %v2398, %v877
    %v2400 = vadd.f32 %v2399, %v881
    %v2401 = vadd.f32 %v2400, %v885
    %v2402 = vadd.f32 %v2401, %v889
    %v2403 = vadd.f32 %v2402, %v893
    %v2404 = vadd.f32 %v2403, %v897
    %v2405 = vadd.f32 %v2404, %v901
    %v2406 = vadd.f32 %v2405, %v905
    %v2407 = vadd.f32 %v2406, %v909
    %v2408 = vadd.f32 %v2407, %v913
    %v2409 = vadd.f32 %v2408, %v917
    %v2410 = vadd.f32 %v2409, %v921
    %v2411 = vadd.f32 %v2410, %v925
    %v2412 = vadd.f32 %v2411, %v929
    %v2413 = vrot.slane %v2412, 4
    %v2414 = vadd.f32 %v2412, %v2413
    %v2415 = vrot.slane %v2414, 2
    %v2416 = vadd.f32 %v2414, %v2415
    %v2417 = vrot.slane %v2416, 1
    %v2418 = vadd.f32 %v2416, %v2417
    %v2419 = vadd.f32 %v678, %v682
    %v2420 = vadd.f32 %v2419, %v686
    %v2421 = vadd.f32 %v2420, %v690
    %v2422 = vadd.f32 %v2421, %v694
    %v2423 = vadd.f32 %v2422, %v698
    %v2424 = vadd.f32 %v2423, %v702
    %v2425 = vadd.f32 %v2424, %v706
    %v2426 = vadd.f32 %v2425, %v710
    %v2427 = vadd.f32 %v2426, %v714
    %v2428 = vadd.f32 %v2427, %v718
    %v2429 = vadd.f32 %v2428, %v722
    %v2430 = vadd.f32 %v2429, %v726
    %v2431 = vadd.f32 %v2430, %v730
    %v2432 = vadd.f32 %v2431, %v734
    %v2433 = vadd.f32 %v2432, %v738
    %v2434 = vadd.f32 %v2433, %v742
    %v2435 = vadd.f32 %v2434, %v746
    %v2436 = vadd.f32 %v2435, %v750
    %v2437 = vadd.f32 %v2436, %v754
    %v2438 = vadd.f32 %v2437, %v758
    %v2439 = vadd.f32 %v2438, %v762
    %v2440 = vadd.f32 %v2439, %v766
    %v2441 = vadd.f32 %v2440, %v770
    %v2442 = vadd.f32 %v2441, %v774
    %v2443 = vadd.f32 %v2442, %v778
    %v2444 = vadd.f32 %v2443, %v782
    %v2445 = vadd.f32 %v2444, %v786
    %v2446 = vadd.f32 %v2445, %v790
    %v2447 = vadd.f32 %v2446, %v794
    %v2448 = vadd.f32 %v2447, %v798
    %v2449 = vadd.f32 %v2448, %v802
    %v2450 = vadd.f32 %v2449, %v806
    %v2451 = vadd.f32 %v2450, %v810
    %v2452 = vadd.f32 %v2451, %v814
    %v2453 = vadd.f32 %v2452, %v818
    %v2454 = vadd.f32 %v2453, %v822
    %v2455 = vadd.f32 %v2454, %v826
    %v2456 = vadd.f32 %v2455, %v830
    %v2457 = vadd.f32 %v2456, %v834
    %v2458 = vadd.f32 %v2457, %v838
    %v2459 = vadd.f32 %v2458, %v842
    %v2460 = vadd.f32 %v2459, %v846
    %v2461 = vadd.f32 %v2460, %v850
    %v2462 = vadd.f32 %v2461, %v854
    %v2463 = vadd.f32 %v2462, %v858
    %v2464 = vadd.f32 %v2463, %v862
    %v2465 = vadd.f32 %v2464, %v866
    %v2466 = vadd.f32 %v2465, %v870
    %v2467 = vadd.f32 %v2466, %v874
    %v2468 = vadd.f32 %v2467, %v878
    %v2469 = vadd.f32 %v2468, %v882
    %v2470 = vadd.f32 %v2469, %v886
    %v2471 = vadd.f32 %v2470, %v890
    %v2472 = vadd.f32 %v2471, %v894
    %v2473 = vadd.f32 %v2472, %v898
    %v2474 = vadd.f32 %v2473, %v902
    %v2475 = vadd.f32 %v2474, %v906
    %v2476 = vadd.f32 %v2475, %v910
    %v2477 = vadd.f32 %v2476, %v914
    %v2478 = vadd.f32 %v2477, %v918
    %v2479 = vadd.f32 %v2478, %v922
    %v2480 = vadd.f32 %v2479, %v926
    %v2481 = vadd.f32 %v2480, %v930
    %v2482 = vrot.slane %v2481, 4
    %v2483 = vadd.f32 %v2481, %v2482
    %v2484 = vrot.slane %v2483, 2
    %v2485 = vadd.f32 %v2483, %v2484
    %v2486 = vrot.slane %v2485, 1
    %v2487 = vadd.f32 %v2485, %v2486
    %v2492 = vcombine.low %v2280, %v2349
    %v2493 = vcombine.low %v2418, %v2487
    %v2495 = vunpack.c.l.s4 1966171168
    %v2496 = vunpack.c.0.s8 %v2495
    %v2497 = vlaneseq
    %v2498 = vshrl.u32 %v2497, 7
    %v2499 = vsub.s32 %v2496, %v2498
    %v2500 = vrot.slane %v2492, %v2499
    %v2502 = vunpack.c.l.s4 1966171168
    %v2503 = vunpack.c.0.s8 %v2502
    %v2504 = vlaneseq
    %v2505 = vshrl.u32 %v2504, 7
    %v2506 = vsub.s32 %v2503, %v2505
    %v2507 = vrot.slane %v2493, %v2506
    %v2508 = vcombine.low %v2500, %v2507
    %v2510 = vunpack.c.l.s4 1966171168
    %v2511 = vunpack.c.0.s8 %v2510
    %v2512 = vlaneseq
    %v2513 = vshrl.u32 %v2512, 7
    %v2514 = vsub.s32 %v2511, %v2513
    %v2515 = vrot.slane %v2508, %v2514
    %v2517 = vlaneseq
    %vm2518 = vcmp.ge.s32.totalorder %v2517, 0
    %vm2519 = vcmp.lt.s32.totalorder %v2517, 512
    %vm2520 = vmand %vm2518, %vm2519
    %2521 = vst.msk [vmem:[#allocation6] sm:$0xf] %vm2520, %v2515
    // Predicated region
    $region10: #{tpu_custom_call.1} parent=1 // pred_check
      _
    $region11: #{tpu_custom_call.1} parent=1 // pred_check_branch
      %2523 = sbr.rel (0) target = $region13
    $region12: #{tpu_custom_call.1} parent=1 // pred_region
      %s2525 = ssub.s32 16384, 16384
      %2526 = vsyncadd [#allocation4], %s2525
      %s2527 = sshll.u32 [#allocation5], 4
      %s2528 = int_to_ptr.vmem [resolvable:$true] %s2527
      %2533 = dma.vmem_to_hbm [thread:$0]  %s2528, 16384, %s1, [#allocation4], 256, 256, 16
    $region13: #{tpu_custom_call.1} parent=1 // pred_fallthru
      _
    // Predicated region
    $region14: #{tpu_custom_call.1} parent=1 // pred_check
      _
    $region15: #{tpu_custom_call.1} parent=1 // pred_check_branch
      %2535 = sbr.rel (0) target = $region17
    $region16: #{tpu_custom_call.1} parent=1 // pred_region
      _
    $region17: #{tpu_custom_call.1} parent=1 // pred_fallthru
      _
    // Predicated region
    $region18: #{tpu_custom_call.1} parent=1 // pred_check
      _
    $region19: #{tpu_custom_call.1} parent=1 // pred_check_branch
      %2537 = sbr.rel (0) target = $region21
    $region20: #{tpu_custom_call.1} parent=1 // pred_region
      %s2539 = ssub.s32 64, 64
      %2540 = vsyncadd [#allocation7], %s2539
      %s2542 = sshll.u32 [#allocation6], 4
      %s2543 = int_to_ptr.vmem [resolvable:$true] %s2542
      %2545 = dma.vmem_to_hbm [thread:$0]  %s2543, 64, %s3, [#allocation7]
    $region21: #{tpu_custom_call.1} parent=1 // pred_fallthru
      _
    // Predicated region
    $region22: #{tpu_custom_call.1} parent=1 // pred_check
      _
    $region23: #{tpu_custom_call.1} parent=1 // pred_check_branch
      %2547 = sbr.rel (0) target = $region25
    $region24: #{tpu_custom_call.1} parent=1 // pred_region
      %2548 = dma.done [#allocation4], 16384
    $region25: #{tpu_custom_call.1} parent=1 // pred_fallthru
      _
    // Predicated region
    $region26: #{tpu_custom_call.1} parent=1 // pred_check
      _
    $region27: #{tpu_custom_call.1} parent=1 // pred_check_branch
      %2550 = sbr.rel (0) target = $region29
    $region28: #{tpu_custom_call.1} parent=1 // pred_region
      _
    $region29: #{tpu_custom_call.1} parent=1 // pred_fallthru
      _
    // Predicated region
    $region30: #{tpu_custom_call.1} parent=1 // pred_check
      _
    $region31: #{tpu_custom_call.1} parent=1 // pred_check_branch
      %2552 = sbr.rel (0) target = $region33
    $region32: #{tpu_custom_call.1} parent=1 // pred_region
      %2553 = dma.done [#allocation7], 64
    $region33: #{tpu_custom_call.1} parent=1 // pred_fallthru
      _
    %2554 = vsyncpa [#allocation3], 1
    %2555 = vsyncpa [#allocation4], 1
    %2556 = vsyncpa [#allocation7], 1

</llo_original>
